<compile_context>
chip_gen: v7x
topology: tpu7x:2x2x1
jax: 0.10.0
libtpu: 0.0.40
codegen_flags: <defaults>
</compile_context>

<pallas_src>
import jax
import jax.numpy as jnp
from jax import lax
from jax.experimental import pallas as pl
from jax.experimental.pallas import tpu as pltpu

# ---- problem sizes (consistent with the module) ----
N      = 32     # input_nodes (genes / graph nodes)
F      = 3      # feature_len = 3
G_HID  = 16     # GNN hidden width
DIM    = 1      # GNN output dim = 1
C_HID  = 32     # Coxnn hidden width

TB     = 128    # samples per grid step (lane-dense blocks).  On single-TC chips
                # (v5e/v6e) tb may be set to the full padded batch -> grid=(1,).

# ---- SMEM scalar vector (tiny GNN params, used as scalar splats in the j-loop) ----
IDX_W0   = 0                    # w0 flattened row-major: w0[k, j] at k*G_HID + j  (48 vals)
IDX_B0   = F * G_HID            # 48: b0[j]
IDX_W1   = IDX_B0 + G_HID       # 64: w1[j]
IDX_B1   = IDX_W1 + G_HID       # 80: b1
SVEC_LEN = 96                   # padded length (1-D f32 in SMEM)

# ---- VMEM parameter slab (Cox weights only, transposed for batch-on-lanes) ----
SLAB_COLS = 32                  # = max(N, C_HID); full-array lane dim (allowed)
R_CW1T = 0                      # cw1^T [C_HID, N]
R_CW2T = 32                     # cw2^T [C_HID, C_HID]
R_CB1  = 64                     # cb1 column [C_HID, 1] at lane 0
R_CB2  = 96                     # cb2 column
R_CWO  = 128                    # cwo column (risk head, no bias)
SLAB_ROWS = 160


def graphsurv_kernel(svec_ref, adj_ref, slab_ref, x_ref, out_ref):
    """One grid step = tb samples (batch on lanes).
    svec [SVEC_LEN] (SMEM), adj [N,N], slab [SLAB_ROWS,SLAB_COLS], x [N, F*tb] -> out [1, tb]."""
    tb = out_ref.shape[1]
    adj = adj_ref[...]                                               # [N, N]

    # --- GNN aggregation: ONE MXU push for all F feature channels ---
    xa = jnp.dot(adj, x_ref[...], preferred_element_type=jnp.float32)   # [N, F*tb]
    xa0 = xa[:, 0 * tb:1 * tb]                                       # 128-aligned lane slices
    xa1 = xa[:, 1 * tb:2 * tb]
    xa2 = xa[:, 2 * tb:3 * tb]

    # --- fused GNN layer-1 projection + layer-2 G_HID reduction (no 3-D intermediate) ---
    #   h1_j[n, b] = relu(sum_k xa_k[n, b] * w0[k, j] + b0[j])   (scalar splats from SMEM)
    #   r[n, b]    = sum_j w1[j] * h1_j[n, b]
    r = None
    for j in range(G_HID):                                           # static unroll, 16 iters
        pre = xa0 * svec_ref[IDX_W0 + j]
        pre = pre + xa1 * svec_ref[IDX_W0 + G_HID + j]
        pre = pre + xa2 * svec_ref[IDX_W0 + 2 * G_HID + j]
        h_j = jnp.maximum(pre + svec_ref[IDX_B0 + j], 0.0)           # [N, tb]
        term = h_j * svec_ref[IDX_W1 + j]
        r = term if r is None else r + term                          # [N, tb]

    # --- GNN layer 2: relu(A @ r + b1) ;  g[:, b] == GNN_out (transpose falls out of layout) ---
    g = jnp.maximum(jnp.dot(adj, r, preferred_element_type=jnp.float32)
                    + svec_ref[IDX_B1], 0.0)                         # [N, tb]

    # --- Coxnn: tanh MLP, linear risk head (no bias), computed as W^T @ act (batch on lanes) ---
    cw1t = slab_ref[R_CW1T:R_CW1T + C_HID, 0:N]                      # [C_HID, N]
    cb1  = slab_ref[R_CB1:R_CB1 + C_HID, 0:1]                        # [C_HID, 1]
    z = jnp.tanh(jnp.dot(cw1t, g, preferred_element_type=jnp.float32) + cb1)
    cw2t = slab_ref[R_CW2T:R_CW2T + C_HID, 0:C_HID]                  # [C_HID, C_HID]
    cb2  = slab_ref[R_CB2:R_CB2 + C_HID, 0:1]
    z = jnp.tanh(jnp.dot(cw2t, z, preferred_element_type=jnp.float32) + cb2)
    cwo = slab_ref[R_CWO:R_CWO + C_HID, 0:1]                         # [C_HID, 1]
    # risk[0, b] = sum_c z[c, b] * cwo[c]  -> lane-dense [1, tb] row (unmasked stores)
    out_ref[...] = jnp.sum(z * cwo, axis=0, keepdims=True)


def pack_smem_params(p):
    """Tiny GNN parameters (81 scalars) -> 1-D f32 vector for SMEM."""
    svec = jnp.zeros((SVEC_LEN,), jnp.float32)
    svec = svec.at[IDX_W0:IDX_W0 + F * G_HID].set(p["w0"].reshape(-1))   # w0[k, j] @ k*G_HID+j
    svec = svec.at[IDX_B0:IDX_B0 + G_HID].set(p["b0"].reshape(-1))
    svec = svec.at[IDX_W1:IDX_W1 + G_HID].set(p["w1"].reshape(-1))
    svec = svec.at[IDX_B1:IDX_B1 + 1].set(p["b1"].reshape(-1))
    return svec


def pack_vmem_params(p):
    """Cox-head weights, transposed for batch-on-lanes, in one small VMEM slab."""
    slab = jnp.zeros((SLAB_ROWS, SLAB_COLS), jnp.float32)
    slab = slab.at[R_CW1T:R_CW1T + C_HID, 0:N].set(p["cw1"].T)           # [C_HID, N]
    slab = slab.at[R_CW2T:R_CW2T + C_HID, 0:C_HID].set(p["cw2"].T)       # [C_HID, C_HID]
    slab = slab.at[R_CB1:R_CB1 + C_HID, 0:1].set(p["cb1"].reshape(C_HID, 1))
    slab = slab.at[R_CB2:R_CB2 + C_HID, 0:1].set(p["cb2"].reshape(C_HID, 1))
    slab = slab.at[R_CWO:R_CWO + C_HID, 0:1].set(p["cwo"].reshape(C_HID, 1))
    return slab


def graphsurv_forward(adj, xb, params, *, tb=TB):
    """Batched GraphSurv forward: xb [B, N, F] -> risks [B, 1] (one Cox risk per sample)."""
    assert tb % 128 == 0, "per-step tile must keep the output lane-dense"
    B = xb.shape[0]
    nb = -(-B // tb)                                  # cdiv; arbitrary B via zero padding
    Bp = nb * tb

    x = jnp.asarray(xb, jnp.float32)
    if Bp != B:
        x = jnp.pad(x, ((0, Bp - B), (0, 0), (0, 0)))  # padded samples are independent; sliced off

    # Batch-on-lanes, feature-blocked layout:
    #   xt[n, i*(F*tb) + k*tb + t] = x[i*tb + t, n, k]
    xt = jnp.transpose(x, (1, 2, 0)).reshape(N, F, nb, tb)
    xt = jnp.transpose(xt, (0, 2, 1, 3)).reshape(N, nb * F * tb)      # [N, F*Bp]

    adjf = jnp.asarray(adj, jnp.float32)              # [N, N] (used on the left: adj @ x)
    slab = pack_vmem_params(params)
    svec = pack_smem_params(params)

    flops_per_sample = (2 * N * N * F            # aggregation matmul
                        + 9 * G_HID * N          # fused j-loop (VPU)
                        + 2 * N * N              # layer-2 aggregation
                        + 2 * N * C_HID + 2 * C_HID * C_HID + 3 * C_HID)  # Cox head
    out = pl.pallas_call(
        graphsurv_kernel,
        out_shape=jax.ShapeDtypeStruct((1, Bp), jnp.float32),
        grid=(nb,),
        in_specs=[
            pl.BlockSpec(memory_space=pltpu.MemorySpace.SMEM),          # tiny GNN scalars
            pl.BlockSpec((N, N), lambda i: (0, 0)),                     # adj, resident
            pl.BlockSpec((SLAB_ROWS, SLAB_COLS), lambda i: (0, 0)),     # Cox weights, resident
            pl.BlockSpec((N, F * tb), lambda i: (0, i)),                # stream x blocks
        ],
        out_specs=pl.BlockSpec((1, tb), lambda i: (0, i)),              # lane-dense risk row
        compiler_params=pltpu.CompilerParams(
            dimension_semantics=("parallel",)),                         # v7x: 2 TCs share batch
        cost_estimate=pl.CostEstimate(
            flops=int(Bp * flops_per_sample),
            transcendentals=int(2 * Bp * C_HID),
            bytes_accessed=int(4 * (N * F * Bp + N * N
                                    + SLAB_ROWS * SLAB_COLS + SVEC_LEN + Bp))),
    )(svec, adjf, slab, xt)
    return out[0, :B].reshape(B, 1)


def reference_forward(adj, x, p):
    """Pure-JAX reference for a single sample, mirroring the PyTorch module."""
    h = jnp.maximum(adj @ (x @ p["w0"]) + p["b0"], 0.0)
    h = jnp.maximum(adj @ (h @ p["w1"]) + p["b1"], 0.0)
    g = h.T
    z = jnp.tanh(g @ p["cw1"] + p["cb1"])
    z = jnp.tanh(z @ p["cw2"] + p["cb2"])
    return z @ p["cwo"]


def make_params(key):
    ks = jax.random.split(key, 8)
    s = 0.2
    return {
        # GNN (weights stored [in, out]; equivalent to torch Linear weight.T)
        "w0":  s * jax.random.normal(ks[0], (F, G_HID), jnp.float32),
        "b0":  s * jax.random.normal(ks[1], (1, G_HID), jnp.float32),
        "w1":  s * jax.random.normal(ks[2], (G_HID, DIM), jnp.float32),
        "b1":  s * jax.random.normal(ks[3], (1, DIM), jnp.float32),
        # Coxnn
        "cw1": s * jax.random.normal(ks[4], (N, C_HID), jnp.float32),
        "cb1": s * jax.random.normal(ks[5], (1, C_HID), jnp.float32),
        "cw2": s * jax.random.normal(ks[6], (C_HID, C_HID), jnp.float32),
        "cb2": jnp.zeros((1, C_HID), jnp.float32),
        "cwo": s * jax.random.normal(ks[7], (C_HID, 1), jnp.float32),  # risk head, no bias
    }


if __name__ == "__main__":
    key = jax.random.PRNGKey(0)
    k_x, k_p = jax.random.split(key)

    # Deterministic graph: self-loops + ring, row-normalized adjacency.
    eye = jnp.eye(N, dtype=jnp.float32)
    ring = jnp.roll(eye, 1, axis=1) + jnp.roll(eye, -1, axis=1)
    a = eye + ring
    adj = a / jnp.sum(a, axis=1, keepdims=True)

    B = 200                                     # not a multiple of 128 -> exercises batch padding
    xb = jax.random.normal(k_x, (B, N, F), jnp.float32)
    params = make_params(k_p)

    risks = graphsurv_forward(adj, xb, params)
    risks = jax.block_until_ready(risks)
    assert risks.shape == (B, 1)

    ref = jax.vmap(lambda xs: reference_forward(adj, xs, params))(xb).reshape(B, 1)
    # Tolerance accounts for the XLA-side reference possibly running its f32 dots as
    # single-pass-bf16 MXU matmuls (default TPU matmul precision); the kernel keeps
    # f32 operands and f32 accumulation throughout.
    assert jnp.allclose(risks, ref, rtol=1e-2, atol=1e-2), (
        float(jnp.max(jnp.abs(risks - ref))))

    print("KERNEL_OK")
</pallas_src>

<mosaic_0001>
module attributes {stable_mosaic.version = 11 : i64} {
  func.func @graphsurv_kernel(%arg0: i32, %arg1: memref<96xf32, #tpu.memory_space<smem>>, %arg2: memref<32x32xf32, #tpu.memory_space<vmem>>, %arg3: memref<160x32xf32, #tpu.memory_space<vmem>>, %arg4: memref<32x384xf32, #tpu.memory_space<vmem>>, %arg5: memref<1x128xf32, #tpu.memory_space<vmem>>) attributes {dimension_semantics = [#tpu.dimension_semantics<parallel>], iteration_bounds = array<i64: 2>, scalar_prefetch = 0 : i64, scratch_operands = 0 : i64, tpu.core_type = #tpu.core_type<tc>, window_params = [{transform_indices = @transform_0, window_bounds = array<i64: 96>}, {pipeline_mode = #tpu.pipeline_mode<synchronous>, transform_indices = @transform_1, window_bounds = array<i64: 32, 32>}, {pipeline_mode = #tpu.pipeline_mode<synchronous>, transform_indices = @transform_2, window_bounds = array<i64: 160, 32>}, {transform_indices = @transform_3, window_bounds = array<i64: 32, 384>}, {transform_indices = @transform_4, window_bounds = array<i64: 1, 128>}]} {
    %c0 = arith.constant 0 : index
    %c0_0 = arith.constant 0 : index
    %0 = vector.load %arg2[%c0, %c0_0] : memref<32x32xf32, #tpu.memory_space<vmem>>, vector<32x32xf32>
    %c0_1 = arith.constant 0 : index
    %c0_2 = arith.constant 0 : index
    %1 = vector.load %arg4[%c0_1, %c0_2] : memref<32x384xf32, #tpu.memory_space<vmem>>, vector<32x384xf32>
    %cst = arith.constant dense<0.000000e+00> : vector<32x384xf32>
    %2 = tpu.matmul %0, %1, %cst {dimension_numbers = #tpu.dot_dimension_numbers<[1], [0], [0], [1], [0, 0, 1, 1], [], []>} : vector<32x32xf32>, vector<32x384xf32>, vector<32x384xf32> -> vector<32x384xf32>
    %3 = vector.extract_strided_slice %2 {offsets = [0, 0], sizes = [32, 128], strides = [1, 1]} : vector<32x384xf32> to vector<32x128xf32>
    %4 = vector.extract_strided_slice %2 {offsets = [0, 128], sizes = [32, 128], strides = [1, 1]} : vector<32x384xf32> to vector<32x128xf32>
    %5 = vector.extract_strided_slice %2 {offsets = [0, 256], sizes = [32, 128], strides = [1, 1]} : vector<32x384xf32> to vector<32x128xf32>
    %c0_3 = arith.constant 0 : index
    %6 = memref.load %arg1[%c0_3] : memref<96xf32, #tpu.memory_space<smem>>
    %7 = vector.broadcast %6 : f32 to vector<32x128xf32>
    %8 = arith.mulf %3, %7 : vector<32x128xf32>
    %c16 = arith.constant 16 : index
    %9 = memref.load %arg1[%c16] : memref<96xf32, #tpu.memory_space<smem>>
    %10 = vector.broadcast %9 : f32 to vector<32x128xf32>
    %11 = arith.mulf %4, %10 : vector<32x128xf32>
    %12 = arith.addf %8, %11 : vector<32x128xf32>
    %c32 = arith.constant 32 : index
    %13 = memref.load %arg1[%c32] : memref<96xf32, #tpu.memory_space<smem>>
    %14 = vector.broadcast %13 : f32 to vector<32x128xf32>
    %15 = arith.mulf %5, %14 : vector<32x128xf32>
    %16 = arith.addf %12, %15 : vector<32x128xf32>
    %c48 = arith.constant 48 : index
    %17 = memref.load %arg1[%c48] : memref<96xf32, #tpu.memory_space<smem>>
    %18 = vector.broadcast %17 : f32 to vector<32x128xf32>
    %19 = arith.addf %16, %18 : vector<32x128xf32>
    %cst_4 = arith.constant 0.000000e+00 : f32
    %20 = vector.broadcast %cst_4 : f32 to vector<32x128xf32>
    %21 = arith.maximumf %19, %20 : vector<32x128xf32>
    %c64 = arith.constant 64 : index
    %22 = memref.load %arg1[%c64] : memref<96xf32, #tpu.memory_space<smem>>
    %23 = vector.broadcast %22 : f32 to vector<32x128xf32>
    %24 = arith.mulf %21, %23 : vector<32x128xf32>
    %c1 = arith.constant 1 : index
    %25 = memref.load %arg1[%c1] : memref<96xf32, #tpu.memory_space<smem>>
    %26 = vector.broadcast %25 : f32 to vector<32x128xf32>
    %27 = arith.mulf %3, %26 : vector<32x128xf32>
    %c17 = arith.constant 17 : index
    %28 = memref.load %arg1[%c17] : memref<96xf32, #tpu.memory_space<smem>>
    %29 = vector.broadcast %28 : f32 to vector<32x128xf32>
    %30 = arith.mulf %4, %29 : vector<32x128xf32>
    %31 = arith.addf %27, %30 : vector<32x128xf32>
    %c33 = arith.constant 33 : index
    %32 = memref.load %arg1[%c33] : memref<96xf32, #tpu.memory_space<smem>>
    %33 = vector.broadcast %32 : f32 to vector<32x128xf32>
    %34 = arith.mulf %5, %33 : vector<32x128xf32>
    %35 = arith.addf %31, %34 : vector<32x128xf32>
    %c49 = arith.constant 49 : index
    %36 = memref.load %arg1[%c49] : memref<96xf32, #tpu.memory_space<smem>>
    %37 = vector.broadcast %36 : f32 to vector<32x128xf32>
    %38 = arith.addf %35, %37 : vector<32x128xf32>
    %cst_5 = arith.constant 0.000000e+00 : f32
    %39 = vector.broadcast %cst_5 : f32 to vector<32x128xf32>
    %40 = arith.maximumf %38, %39 : vector<32x128xf32>
    %c65 = arith.constant 65 : index
    %41 = memref.load %arg1[%c65] : memref<96xf32, #tpu.memory_space<smem>>
    %42 = vector.broadcast %41 : f32 to vector<32x128xf32>
    %43 = arith.mulf %40, %42 : vector<32x128xf32>
    %44 = arith.addf %24, %43 : vector<32x128xf32>
    %c2 = arith.constant 2 : index
    %45 = memref.load %arg1[%c2] : memref<96xf32, #tpu.memory_space<smem>>
    %46 = vector.broadcast %45 : f32 to vector<32x128xf32>
    %47 = arith.mulf %3, %46 : vector<32x128xf32>
    %c18 = arith.constant 18 : index
    %48 = memref.load %arg1[%c18] : memref<96xf32, #tpu.memory_space<smem>>
    %49 = vector.broadcast %48 : f32 to vector<32x128xf32>
    %50 = arith.mulf %4, %49 : vector<32x128xf32>
    %51 = arith.addf %47, %50 : vector<32x128xf32>
    %c34 = arith.constant 34 : index
    %52 = memref.load %arg1[%c34] : memref<96xf32, #tpu.memory_space<smem>>
    %53 = vector.broadcast %52 : f32 to vector<32x128xf32>
    %54 = arith.mulf %5, %53 : vector<32x128xf32>
    %55 = arith.addf %51, %54 : vector<32x128xf32>
    %c50 = arith.constant 50 : index
    %56 = memref.load %arg1[%c50] : memref<96xf32, #tpu.memory_space<smem>>
    %57 = vector.broadcast %56 : f32 to vector<32x128xf32>
    %58 = arith.addf %55, %57 : vector<32x128xf32>
    %cst_6 = arith.constant 0.000000e+00 : f32
    %59 = vector.broadcast %cst_6 : f32 to vector<32x128xf32>
    %60 = arith.maximumf %58, %59 : vector<32x128xf32>
    %c66 = arith.constant 66 : index
    %61 = memref.load %arg1[%c66] : memref<96xf32, #tpu.memory_space<smem>>
    %62 = vector.broadcast %61 : f32 to vector<32x128xf32>
    %63 = arith.mulf %60, %62 : vector<32x128xf32>
    %64 = arith.addf %44, %63 : vector<32x128xf32>
    %c3 = arith.constant 3 : index
    %65 = memref.load %arg1[%c3] : memref<96xf32, #tpu.memory_space<smem>>
    %66 = vector.broadcast %65 : f32 to vector<32x128xf32>
    %67 = arith.mulf %3, %66 : vector<32x128xf32>
    %c19 = arith.constant 19 : index
    %68 = memref.load %arg1[%c19] : memref<96xf32, #tpu.memory_space<smem>>
    %69 = vector.broadcast %68 : f32 to vector<32x128xf32>
    %70 = arith.mulf %4, %69 : vector<32x128xf32>
    %71 = arith.addf %67, %70 : vector<32x128xf32>
    %c35 = arith.constant 35 : index
    %72 = memref.load %arg1[%c35] : memref<96xf32, #tpu.memory_space<smem>>
    %73 = vector.broadcast %72 : f32 to vector<32x128xf32>
    %74 = arith.mulf %5, %73 : vector<32x128xf32>
    %75 = arith.addf %71, %74 : vector<32x128xf32>
    %c51 = arith.constant 51 : index
    %76 = memref.load %arg1[%c51] : memref<96xf32, #tpu.memory_space<smem>>
    %77 = vector.broadcast %76 : f32 to vector<32x128xf32>
    %78 = arith.addf %75, %77 : vector<32x128xf32>
    %cst_7 = arith.constant 0.000000e+00 : f32
    %79 = vector.broadcast %cst_7 : f32 to vector<32x128xf32>
    %80 = arith.maximumf %78, %79 : vector<32x128xf32>
    %c67 = arith.constant 67 : index
    %81 = memref.load %arg1[%c67] : memref<96xf32, #tpu.memory_space<smem>>
    %82 = vector.broadcast %81 : f32 to vector<32x128xf32>
    %83 = arith.mulf %80, %82 : vector<32x128xf32>
    %84 = arith.addf %64, %83 : vector<32x128xf32>
    %c4 = arith.constant 4 : index
    %85 = memref.load %arg1[%c4] : memref<96xf32, #tpu.memory_space<smem>>
    %86 = vector.broadcast %85 : f32 to vector<32x128xf32>
    %87 = arith.mulf %3, %86 : vector<32x128xf32>
    %c20 = arith.constant 20 : index
    %88 = memref.load %arg1[%c20] : memref<96xf32, #tpu.memory_space<smem>>
    %89 = vector.broadcast %88 : f32 to vector<32x128xf32>
    %90 = arith.mulf %4, %89 : vector<32x128xf32>
    %91 = arith.addf %87, %90 : vector<32x128xf32>
    %c36 = arith.constant 36 : index
    %92 = memref.load %arg1[%c36] : memref<96xf32, #tpu.memory_space<smem>>
    %93 = vector.broadcast %92 : f32 to vector<32x128xf32>
    %94 = arith.mulf %5, %93 : vector<32x128xf32>
    %95 = arith.addf %91, %94 : vector<32x128xf32>
    %c52 = arith.constant 52 : index
    %96 = memref.load %arg1[%c52] : memref<96xf32, #tpu.memory_space<smem>>
    %97 = vector.broadcast %96 : f32 to vector<32x128xf32>
    %98 = arith.addf %95, %97 : vector<32x128xf32>
    %cst_8 = arith.constant 0.000000e+00 : f32
    %99 = vector.broadcast %cst_8 : f32 to vector<32x128xf32>
    %100 = arith.maximumf %98, %99 : vector<32x128xf32>
    %c68 = arith.constant 68 : index
    %101 = memref.load %arg1[%c68] : memref<96xf32, #tpu.memory_space<smem>>
    %102 = vector.broadcast %101 : f32 to vector<32x128xf32>
    %103 = arith.mulf %100, %102 : vector<32x128xf32>
    %104 = arith.addf %84, %103 : vector<32x128xf32>
    %c5 = arith.constant 5 : index
    %105 = memref.load %arg1[%c5] : memref<96xf32, #tpu.memory_space<smem>>
    %106 = vector.broadcast %105 : f32 to vector<32x128xf32>
    %107 = arith.mulf %3, %106 : vector<32x128xf32>
    %c21 = arith.constant 21 : index
    %108 = memref.load %arg1[%c21] : memref<96xf32, #tpu.memory_space<smem>>
    %109 = vector.broadcast %108 : f32 to vector<32x128xf32>
    %110 = arith.mulf %4, %109 : vector<32x128xf32>
    %111 = arith.addf %107, %110 : vector<32x128xf32>
    %c37 = arith.constant 37 : index
    %112 = memref.load %arg1[%c37] : memref<96xf32, #tpu.memory_space<smem>>
    %113 = vector.broadcast %112 : f32 to vector<32x128xf32>
    %114 = arith.mulf %5, %113 : vector<32x128xf32>
    %115 = arith.addf %111, %114 : vector<32x128xf32>
    %c53 = arith.constant 53 : index
    %116 = memref.load %arg1[%c53] : memref<96xf32, #tpu.memory_space<smem>>
    %117 = vector.broadcast %116 : f32 to vector<32x128xf32>
    %118 = arith.addf %115, %117 : vector<32x128xf32>
    %cst_9 = arith.constant 0.000000e+00 : f32
    %119 = vector.broadcast %cst_9 : f32 to vector<32x128xf32>
    %120 = arith.maximumf %118, %119 : vector<32x128xf32>
    %c69 = arith.constant 69 : index
    %121 = memref.load %arg1[%c69] : memref<96xf32, #tpu.memory_space<smem>>
    %122 = vector.broadcast %121 : f32 to vector<32x128xf32>
    %123 = arith.mulf %120, %122 : vector<32x128xf32>
    %124 = arith.addf %104, %123 : vector<32x128xf32>
    %c6 = arith.constant 6 : index
    %125 = memref.load %arg1[%c6] : memref<96xf32, #tpu.memory_space<smem>>
    %126 = vector.broadcast %125 : f32 to vector<32x128xf32>
    %127 = arith.mulf %3, %126 : vector<32x128xf32>
    %c22 = arith.constant 22 : index
    %128 = memref.load %arg1[%c22] : memref<96xf32, #tpu.memory_space<smem>>
    %129 = vector.broadcast %128 : f32 to vector<32x128xf32>
    %130 = arith.mulf %4, %129 : vector<32x128xf32>
    %131 = arith.addf %127, %130 : vector<32x128xf32>
    %c38 = arith.constant 38 : index
    %132 = memref.load %arg1[%c38] : memref<96xf32, #tpu.memory_space<smem>>
    %133 = vector.broadcast %132 : f32 to vector<32x128xf32>
    %134 = arith.mulf %5, %133 : vector<32x128xf32>
    %135 = arith.addf %131, %134 : vector<32x128xf32>
    %c54 = arith.constant 54 : index
    %136 = memref.load %arg1[%c54] : memref<96xf32, #tpu.memory_space<smem>>
    %137 = vector.broadcast %136 : f32 to vector<32x128xf32>
    %138 = arith.addf %135, %137 : vector<32x128xf32>
    %cst_10 = arith.constant 0.000000e+00 : f32
    %139 = vector.broadcast %cst_10 : f32 to vector<32x128xf32>
    %140 = arith.maximumf %138, %139 : vector<32x128xf32>
    %c70 = arith.constant 70 : index
    %141 = memref.load %arg1[%c70] : memref<96xf32, #tpu.memory_space<smem>>
    %142 = vector.broadcast %141 : f32 to vector<32x128xf32>
    %143 = arith.mulf %140, %142 : vector<32x128xf32>
    %144 = arith.addf %124, %143 : vector<32x128xf32>
    %c7 = arith.constant 7 : index
    %145 = memref.load %arg1[%c7] : memref<96xf32, #tpu.memory_space<smem>>
    %146 = vector.broadcast %145 : f32 to vector<32x128xf32>
    %147 = arith.mulf %3, %146 : vector<32x128xf32>
    %c23 = arith.constant 23 : index
    %148 = memref.load %arg1[%c23] : memref<96xf32, #tpu.memory_space<smem>>
    %149 = vector.broadcast %148 : f32 to vector<32x128xf32>
    %150 = arith.mulf %4, %149 : vector<32x128xf32>
    %151 = arith.addf %147, %150 : vector<32x128xf32>
    %c39 = arith.constant 39 : index
    %152 = memref.load %arg1[%c39] : memref<96xf32, #tpu.memory_space<smem>>
    %153 = vector.broadcast %152 : f32 to vector<32x128xf32>
    %154 = arith.mulf %5, %153 : vector<32x128xf32>
    %155 = arith.addf %151, %154 : vector<32x128xf32>
    %c55 = arith.constant 55 : index
    %156 = memref.load %arg1[%c55] : memref<96xf32, #tpu.memory_space<smem>>
    %157 = vector.broadcast %156 : f32 to vector<32x128xf32>
    %158 = arith.addf %155, %157 : vector<32x128xf32>
    %cst_11 = arith.constant 0.000000e+00 : f32
    %159 = vector.broadcast %cst_11 : f32 to vector<32x128xf32>
    %160 = arith.maximumf %158, %159 : vector<32x128xf32>
    %c71 = arith.constant 71 : index
    %161 = memref.load %arg1[%c71] : memref<96xf32, #tpu.memory_space<smem>>
    %162 = vector.broadcast %161 : f32 to vector<32x128xf32>
    %163 = arith.mulf %160, %162 : vector<32x128xf32>
    %164 = arith.addf %144, %163 : vector<32x128xf32>
    %c8 = arith.constant 8 : index
    %165 = memref.load %arg1[%c8] : memref<96xf32, #tpu.memory_space<smem>>
    %166 = vector.broadcast %165 : f32 to vector<32x128xf32>
    %167 = arith.mulf %3, %166 : vector<32x128xf32>
    %c24 = arith.constant 24 : index
    %168 = memref.load %arg1[%c24] : memref<96xf32, #tpu.memory_space<smem>>
    %169 = vector.broadcast %168 : f32 to vector<32x128xf32>
    %170 = arith.mulf %4, %169 : vector<32x128xf32>
    %171 = arith.addf %167, %170 : vector<32x128xf32>
    %c40 = arith.constant 40 : index
    %172 = memref.load %arg1[%c40] : memref<96xf32, #tpu.memory_space<smem>>
    %173 = vector.broadcast %172 : f32 to vector<32x128xf32>
    %174 = arith.mulf %5, %173 : vector<32x128xf32>
    %175 = arith.addf %171, %174 : vector<32x128xf32>
    %c56 = arith.constant 56 : index
    %176 = memref.load %arg1[%c56] : memref<96xf32, #tpu.memory_space<smem>>
    %177 = vector.broadcast %176 : f32 to vector<32x128xf32>
    %178 = arith.addf %175, %177 : vector<32x128xf32>
    %cst_12 = arith.constant 0.000000e+00 : f32
    %179 = vector.broadcast %cst_12 : f32 to vector<32x128xf32>
    %180 = arith.maximumf %178, %179 : vector<32x128xf32>
    %c72 = arith.constant 72 : index
    %181 = memref.load %arg1[%c72] : memref<96xf32, #tpu.memory_space<smem>>
    %182 = vector.broadcast %181 : f32 to vector<32x128xf32>
    %183 = arith.mulf %180, %182 : vector<32x128xf32>
    %184 = arith.addf %164, %183 : vector<32x128xf32>
    %c9 = arith.constant 9 : index
    %185 = memref.load %arg1[%c9] : memref<96xf32, #tpu.memory_space<smem>>
    %186 = vector.broadcast %185 : f32 to vector<32x128xf32>
    %187 = arith.mulf %3, %186 : vector<32x128xf32>
    %c25 = arith.constant 25 : index
    %188 = memref.load %arg1[%c25] : memref<96xf32, #tpu.memory_space<smem>>
    %189 = vector.broadcast %188 : f32 to vector<32x128xf32>
    %190 = arith.mulf %4, %189 : vector<32x128xf32>
    %191 = arith.addf %187, %190 : vector<32x128xf32>
    %c41 = arith.constant 41 : index
    %192 = memref.load %arg1[%c41] : memref<96xf32, #tpu.memory_space<smem>>
    %193 = vector.broadcast %192 : f32 to vector<32x128xf32>
    %194 = arith.mulf %5, %193 : vector<32x128xf32>
    %195 = arith.addf %191, %194 : vector<32x128xf32>
    %c57 = arith.constant 57 : index
    %196 = memref.load %arg1[%c57] : memref<96xf32, #tpu.memory_space<smem>>
    %197 = vector.broadcast %196 : f32 to vector<32x128xf32>
    %198 = arith.addf %195, %197 : vector<32x128xf32>
    %cst_13 = arith.constant 0.000000e+00 : f32
    %199 = vector.broadcast %cst_13 : f32 to vector<32x128xf32>
    %200 = arith.maximumf %198, %199 : vector<32x128xf32>
    %c73 = arith.constant 73 : index
    %201 = memref.load %arg1[%c73] : memref<96xf32, #tpu.memory_space<smem>>
    %202 = vector.broadcast %201 : f32 to vector<32x128xf32>
    %203 = arith.mulf %200, %202 : vector<32x128xf32>
    %204 = arith.addf %184, %203 : vector<32x128xf32>
    %c10 = arith.constant 10 : index
    %205 = memref.load %arg1[%c10] : memref<96xf32, #tpu.memory_space<smem>>
    %206 = vector.broadcast %205 : f32 to vector<32x128xf32>
    %207 = arith.mulf %3, %206 : vector<32x128xf32>
    %c26 = arith.constant 26 : index
    %208 = memref.load %arg1[%c26] : memref<96xf32, #tpu.memory_space<smem>>
    %209 = vector.broadcast %208 : f32 to vector<32x128xf32>
    %210 = arith.mulf %4, %209 : vector<32x128xf32>
    %211 = arith.addf %207, %210 : vector<32x128xf32>
    %c42 = arith.constant 42 : index
    %212 = memref.load %arg1[%c42] : memref<96xf32, #tpu.memory_space<smem>>
    %213 = vector.broadcast %212 : f32 to vector<32x128xf32>
    %214 = arith.mulf %5, %213 : vector<32x128xf32>
    %215 = arith.addf %211, %214 : vector<32x128xf32>
    %c58 = arith.constant 58 : index
    %216 = memref.load %arg1[%c58] : memref<96xf32, #tpu.memory_space<smem>>
    %217 = vector.broadcast %216 : f32 to vector<32x128xf32>
    %218 = arith.addf %215, %217 : vector<32x128xf32>
    %cst_14 = arith.constant 0.000000e+00 : f32
    %219 = vector.broadcast %cst_14 : f32 to vector<32x128xf32>
    %220 = arith.maximumf %218, %219 : vector<32x128xf32>
    %c74 = arith.constant 74 : index
    %221 = memref.load %arg1[%c74] : memref<96xf32, #tpu.memory_space<smem>>
    %222 = vector.broadcast %221 : f32 to vector<32x128xf32>
    %223 = arith.mulf %220, %222 : vector<32x128xf32>
    %224 = arith.addf %204, %223 : vector<32x128xf32>
    %c11 = arith.constant 11 : index
    %225 = memref.load %arg1[%c11] : memref<96xf32, #tpu.memory_space<smem>>
    %226 = vector.broadcast %225 : f32 to vector<32x128xf32>
    %227 = arith.mulf %3, %226 : vector<32x128xf32>
    %c27 = arith.constant 27 : index
    %228 = memref.load %arg1[%c27] : memref<96xf32, #tpu.memory_space<smem>>
    %229 = vector.broadcast %228 : f32 to vector<32x128xf32>
    %230 = arith.mulf %4, %229 : vector<32x128xf32>
    %231 = arith.addf %227, %230 : vector<32x128xf32>
    %c43 = arith.constant 43 : index
    %232 = memref.load %arg1[%c43] : memref<96xf32, #tpu.memory_space<smem>>
    %233 = vector.broadcast %232 : f32 to vector<32x128xf32>
    %234 = arith.mulf %5, %233 : vector<32x128xf32>
    %235 = arith.addf %231, %234 : vector<32x128xf32>
    %c59 = arith.constant 59 : index
    %236 = memref.load %arg1[%c59] : memref<96xf32, #tpu.memory_space<smem>>
    %237 = vector.broadcast %236 : f32 to vector<32x128xf32>
    %238 = arith.addf %235, %237 : vector<32x128xf32>
    %cst_15 = arith.constant 0.000000e+00 : f32
    %239 = vector.broadcast %cst_15 : f32 to vector<32x128xf32>
    %240 = arith.maximumf %238, %239 : vector<32x128xf32>
    %c75 = arith.constant 75 : index
    %241 = memref.load %arg1[%c75] : memref<96xf32, #tpu.memory_space<smem>>
    %242 = vector.broadcast %241 : f32 to vector<32x128xf32>
    %243 = arith.mulf %240, %242 : vector<32x128xf32>
    %244 = arith.addf %224, %243 : vector<32x128xf32>
    %c12 = arith.constant 12 : index
    %245 = memref.load %arg1[%c12] : memref<96xf32, #tpu.memory_space<smem>>
    %246 = vector.broadcast %245 : f32 to vector<32x128xf32>
    %247 = arith.mulf %3, %246 : vector<32x128xf32>
    %c28 = arith.constant 28 : index
    %248 = memref.load %arg1[%c28] : memref<96xf32, #tpu.memory_space<smem>>
    %249 = vector.broadcast %248 : f32 to vector<32x128xf32>
    %250 = arith.mulf %4, %249 : vector<32x128xf32>
    %251 = arith.addf %247, %250 : vector<32x128xf32>
    %c44 = arith.constant 44 : index
    %252 = memref.load %arg1[%c44] : memref<96xf32, #tpu.memory_space<smem>>
    %253 = vector.broadcast %252 : f32 to vector<32x128xf32>
    %254 = arith.mulf %5, %253 : vector<32x128xf32>
    %255 = arith.addf %251, %254 : vector<32x128xf32>
    %c60 = arith.constant 60 : index
    %256 = memref.load %arg1[%c60] : memref<96xf32, #tpu.memory_space<smem>>
    %257 = vector.broadcast %256 : f32 to vector<32x128xf32>
    %258 = arith.addf %255, %257 : vector<32x128xf32>
    %cst_16 = arith.constant 0.000000e+00 : f32
    %259 = vector.broadcast %cst_16 : f32 to vector<32x128xf32>
    %260 = arith.maximumf %258, %259 : vector<32x128xf32>
    %c76 = arith.constant 76 : index
    %261 = memref.load %arg1[%c76] : memref<96xf32, #tpu.memory_space<smem>>
    %262 = vector.broadcast %261 : f32 to vector<32x128xf32>
    %263 = arith.mulf %260, %262 : vector<32x128xf32>
    %264 = arith.addf %244, %263 : vector<32x128xf32>
    %c13 = arith.constant 13 : index
    %265 = memref.load %arg1[%c13] : memref<96xf32, #tpu.memory_space<smem>>
    %266 = vector.broadcast %265 : f32 to vector<32x128xf32>
    %267 = arith.mulf %3, %266 : vector<32x128xf32>
    %c29 = arith.constant 29 : index
    %268 = memref.load %arg1[%c29] : memref<96xf32, #tpu.memory_space<smem>>
    %269 = vector.broadcast %268 : f32 to vector<32x128xf32>
    %270 = arith.mulf %4, %269 : vector<32x128xf32>
    %271 = arith.addf %267, %270 : vector<32x128xf32>
    %c45 = arith.constant 45 : index
    %272 = memref.load %arg1[%c45] : memref<96xf32, #tpu.memory_space<smem>>
    %273 = vector.broadcast %272 : f32 to vector<32x128xf32>
    %274 = arith.mulf %5, %273 : vector<32x128xf32>
    %275 = arith.addf %271, %274 : vector<32x128xf32>
    %c61 = arith.constant 61 : index
    %276 = memref.load %arg1[%c61] : memref<96xf32, #tpu.memory_space<smem>>
    %277 = vector.broadcast %276 : f32 to vector<32x128xf32>
    %278 = arith.addf %275, %277 : vector<32x128xf32>
    %cst_17 = arith.constant 0.000000e+00 : f32
    %279 = vector.broadcast %cst_17 : f32 to vector<32x128xf32>
    %280 = arith.maximumf %278, %279 : vector<32x128xf32>
    %c77 = arith.constant 77 : index
    %281 = memref.load %arg1[%c77] : memref<96xf32, #tpu.memory_space<smem>>
    %282 = vector.broadcast %281 : f32 to vector<32x128xf32>
    %283 = arith.mulf %280, %282 : vector<32x128xf32>
    %284 = arith.addf %264, %283 : vector<32x128xf32>
    %c14 = arith.constant 14 : index
    %285 = memref.load %arg1[%c14] : memref<96xf32, #tpu.memory_space<smem>>
    %286 = vector.broadcast %285 : f32 to vector<32x128xf32>
    %287 = arith.mulf %3, %286 : vector<32x128xf32>
    %c30 = arith.constant 30 : index
    %288 = memref.load %arg1[%c30] : memref<96xf32, #tpu.memory_space<smem>>
    %289 = vector.broadcast %288 : f32 to vector<32x128xf32>
    %290 = arith.mulf %4, %289 : vector<32x128xf32>
    %291 = arith.addf %287, %290 : vector<32x128xf32>
    %c46 = arith.constant 46 : index
    %292 = memref.load %arg1[%c46] : memref<96xf32, #tpu.memory_space<smem>>
    %293 = vector.broadcast %292 : f32 to vector<32x128xf32>
    %294 = arith.mulf %5, %293 : vector<32x128xf32>
    %295 = arith.addf %291, %294 : vector<32x128xf32>
    %c62 = arith.constant 62 : index
    %296 = memref.load %arg1[%c62] : memref<96xf32, #tpu.memory_space<smem>>
    %297 = vector.broadcast %296 : f32 to vector<32x128xf32>
    %298 = arith.addf %295, %297 : vector<32x128xf32>
    %cst_18 = arith.constant 0.000000e+00 : f32
    %299 = vector.broadcast %cst_18 : f32 to vector<32x128xf32>
    %300 = arith.maximumf %298, %299 : vector<32x128xf32>
    %c78 = arith.constant 78 : index
    %301 = memref.load %arg1[%c78] : memref<96xf32, #tpu.memory_space<smem>>
    %302 = vector.broadcast %301 : f32 to vector<32x128xf32>
    %303 = arith.mulf %300, %302 : vector<32x128xf32>
    %304 = arith.addf %284, %303 : vector<32x128xf32>
    %c15 = arith.constant 15 : index
    %305 = memref.load %arg1[%c15] : memref<96xf32, #tpu.memory_space<smem>>
    %306 = vector.broadcast %305 : f32 to vector<32x128xf32>
    %307 = arith.mulf %3, %306 : vector<32x128xf32>
    %c31 = arith.constant 31 : index
    %308 = memref.load %arg1[%c31] : memref<96xf32, #tpu.memory_space<smem>>
    %309 = vector.broadcast %308 : f32 to vector<32x128xf32>
    %310 = arith.mulf %4, %309 : vector<32x128xf32>
    %311 = arith.addf %307, %310 : vector<32x128xf32>
    %c47 = arith.constant 47 : index
    %312 = memref.load %arg1[%c47] : memref<96xf32, #tpu.memory_space<smem>>
    %313 = vector.broadcast %312 : f32 to vector<32x128xf32>
    %314 = arith.mulf %5, %313 : vector<32x128xf32>
    %315 = arith.addf %311, %314 : vector<32x128xf32>
    %c63 = arith.constant 63 : index
    %316 = memref.load %arg1[%c63] : memref<96xf32, #tpu.memory_space<smem>>
    %317 = vector.broadcast %316 : f32 to vector<32x128xf32>
    %318 = arith.addf %315, %317 : vector<32x128xf32>
    %cst_19 = arith.constant 0.000000e+00 : f32
    %319 = vector.broadcast %cst_19 : f32 to vector<32x128xf32>
    %320 = arith.maximumf %318, %319 : vector<32x128xf32>
    %c79 = arith.constant 79 : index
    %321 = memref.load %arg1[%c79] : memref<96xf32, #tpu.memory_space<smem>>
    %322 = vector.broadcast %321 : f32 to vector<32x128xf32>
    %323 = arith.mulf %320, %322 : vector<32x128xf32>
    %324 = arith.addf %304, %323 : vector<32x128xf32>
    %cst_20 = arith.constant dense<0.000000e+00> : vector<32x128xf32>
    %325 = tpu.matmul %0, %324, %cst_20 {dimension_numbers = #tpu.dot_dimension_numbers<[1], [0], [0], [1], [0, 0, 1, 1], [], []>} : vector<32x32xf32>, vector<32x128xf32>, vector<32x128xf32> -> vector<32x128xf32>
    %c80 = arith.constant 80 : index
    %326 = memref.load %arg1[%c80] : memref<96xf32, #tpu.memory_space<smem>>
    %327 = vector.broadcast %326 : f32 to vector<32x128xf32>
    %328 = arith.addf %325, %327 : vector<32x128xf32>
    %cst_21 = arith.constant 0.000000e+00 : f32
    %329 = vector.broadcast %cst_21 : f32 to vector<32x128xf32>
    %330 = arith.maximumf %328, %329 : vector<32x128xf32>
    %c0_22 = arith.constant 0 : index
    %c0_23 = arith.constant 0 : index
    %331 = vector.load %arg3[%c0_22, %c0_23] : memref<160x32xf32, #tpu.memory_space<vmem>>, vector<32x32xf32>
    %c64_24 = arith.constant 64 : index
    %c0_25 = arith.constant 0 : index
    %332 = vector.load %arg3[%c64_24, %c0_25] : memref<160x32xf32, #tpu.memory_space<vmem>>, vector<32x1xf32>
    %cst_26 = arith.constant dense<0.000000e+00> : vector<32x128xf32>
    %333 = tpu.matmul %331, %330, %cst_26 {dimension_numbers = #tpu.dot_dimension_numbers<[1], [0], [0], [1], [0, 0, 1, 1], [], []>} : vector<32x32xf32>, vector<32x128xf32>, vector<32x128xf32> -> vector<32x128xf32>
    %334 = vector.broadcast %332 : vector<32x1xf32> to vector<32x128xf32>
    %335 = arith.addf %333, %334 : vector<32x128xf32>
    %336 = math.tanh %335 : vector<32x128xf32>
    %c32_27 = arith.constant 32 : index
    %c0_28 = arith.constant 0 : index
    %337 = vector.load %arg3[%c32_27, %c0_28] : memref<160x32xf32, #tpu.memory_space<vmem>>, vector<32x32xf32>
    %c96 = arith.constant 96 : index
    %c0_29 = arith.constant 0 : index
    %338 = vector.load %arg3[%c96, %c0_29] : memref<160x32xf32, #tpu.memory_space<vmem>>, vector<32x1xf32>
    %cst_30 = arith.constant dense<0.000000e+00> : vector<32x128xf32>
    %339 = tpu.matmul %337, %336, %cst_30 {dimension_numbers = #tpu.dot_dimension_numbers<[1], [0], [0], [1], [0, 0, 1, 1], [], []>} : vector<32x32xf32>, vector<32x128xf32>, vector<32x128xf32> -> vector<32x128xf32>
    %340 = vector.broadcast %338 : vector<32x1xf32> to vector<32x128xf32>
    %341 = arith.addf %339, %340 : vector<32x128xf32>
    %342 = math.tanh %341 : vector<32x128xf32>
    %c128 = arith.constant 128 : index
    %c0_31 = arith.constant 0 : index
    %343 = vector.load %arg3[%c128, %c0_31] : memref<160x32xf32, #tpu.memory_space<vmem>>, vector<32x1xf32>
    %344 = vector.broadcast %343 : vector<32x1xf32> to vector<32x128xf32>
    %345 = arith.mulf %342, %344 : vector<32x128xf32>
    %cst_32 = arith.constant dense<0.000000e+00> : vector<128xf32>
    %346 = vector.multi_reduction <add>, %345, %cst_32 [0] : vector<32x128xf32> to vector<128xf32>
    %347 = vector.shape_cast %346 : vector<128xf32> to vector<1x128xf32>
    %c0_33 = arith.constant 0 : index
    %c0_34 = arith.constant 0 : index
    %348 = vector.load %arg5[%c0_33, %c0_34] : memref<1x128xf32, #tpu.memory_space<vmem>>, vector<1x128xf32>
    tpu.vector_store %arg5[%c0_33, %c0_34], %347 {strides = array<i32>} : memref<1x128xf32, #tpu.memory_space<vmem>>, vector<1x128xf32>,
    return
  }
  func.func @transform_0(%arg0: i32) -> i32 {
    %c0_i32 = arith.constant 0 : i32
    %c0_i32_0 = arith.constant 0 : i32
    return %c0_i32 : i32
  }
  func.func @transform_1(%arg0: i32) -> (i32, i32) {
    %c0_i32 = arith.constant 0 : i32
    %c0_i32_0 = arith.constant 0 : i32
    %c0_i32_1 = arith.constant 0 : i32
    return %c0_i32, %c0_i32_0 : i32, i32
  }
  func.func @transform_2(%arg0: i32) -> (i32, i32) {
    %c0_i32 = arith.constant 0 : i32
    %c0_i32_0 = arith.constant 0 : i32
    %c0_i32_1 = arith.constant 0 : i32
    return %c0_i32, %c0_i32_0 : i32, i32
  }
  func.func @transform_3(%arg0: i32) -> (i32, i32) {
    %c0_i32 = arith.constant 0 : i32
    %c0_i32_0 = arith.constant 0 : i32
    return %c0_i32, %arg0 : i32, i32
  }
  func.func @transform_4(%arg0: i32) -> (i32, i32) {
    %c0_i32 = arith.constant 0 : i32
    %c0_i32_0 = arith.constant 0 : i32
    return %c0_i32, %arg0 : i32, i32
  }
}

</mosaic_0001>

<llo_original>
// kernel: tpu_custom_call.1
$region0: #{tpu_custom_call.1}
  #allocation0 [shape = 'u32[]', space=smem, size = 0x4, offset = 0x4, fixed_abs, tag = 'smem constant byte address 0x4 - core index']
  #allocation1 [shape = 'u32[144,128]{1,0:T(1,128)}', space=vmem, size = 0x12000, scoped, tag = 'internal scratch']
  %s0 = inlined_call_operand.vmem [shape: f32[96], index: 0, kind: input, shape index: {}]
  %s1 = inlined_call_operand.vmem [shape: f32[32,32], index: 1, kind: input, shape index: {}]
  %s2 = inlined_call_operand.vmem [shape: f32[160,32], index: 2, kind: input, shape index: {}]
  %s3 = inlined_call_operand.vmem [shape: f32[32,768], index: 3, kind: input, shape index: {}]
  %s4 = inlined_call_operand.hbm [shape: f32[1,256], index: 4, kind: output, shape index: {}]
  %s5 = sld [smem:[#allocation0]]
  $region76: #{tpu_custom_call.1} parent=0
    _
  %s7 = ssub.s32 1, %s5
  %s8 = scalar_select 0, %s7, %s5
  $region1: #{tpu_custom_call.1} parent=0
    #allocation2 [shape = 'u8[512]{0}', space=smem, size = 0x200, scoped, tag = 'input window, operand 0, single buffered']
    #allocation3 [shape = 's32[2]{0}', space=sflag, size = 0x8, scoped, tag = 'scoped memory for tpu_custom_call.1']
    #allocation4 [shape = 's32[2]{0}', space=sflag, size = 0x8, scoped, tag = 'scoped memory for tpu_custom_call.1']
    #allocation5 [shape = 'u8[98304]{0}', space=vmem, size = 0x18000, scoped, tag = 'input window, operand 3']
    #allocation6 [shape = 'u8[1024]{0}', space=vmem, size = 0x400, scoped, tag = 'output window, operand 0']
    %9 = vsyncpa [#allocation4], 0
    %10 = vsyncpa [#allocation3], 0
    %s11 = scalar_lea.sflag [#allocation3], 1
    %12 = vsyncpa %s11, 0
    loop: start=0, step=1, limit=4
    $region2: #{tpu_custom_call.1} parent=1 // loop_pre_header
      _
    $region3: #{tpu_custom_call.1} parent=1 // loop_header
      %s14 = sphi 0, %s18
      %p15 = scmp.ge.s32.totalorder %s14, 4
      %s22 = sphi 0, %s22
      %s24 = sphi 0, %s22
      %s25 = sphi 0, %s24
      %s39 = sphi 0, %s25
      %s43 = sphi 0, %s43
      %s45 = sphi 0, %s43
      %s46 = sphi 0, %s45
      %s60 = sphi 0, %s46
      %s64 = sphi 0, %s64
      %s66 = sphi 0, %s64
      %s67 = sphi 0, %s66
      %s81 = sphi 0, %s67
      %s87 = sphi 0, %s89
      %s90 = sphi 0, %s87
      %s91 = sphi 0, %s90
      %s107 = sphi 0, %s91
      %s113 = sphi 0, %s115
      %s116 = sphi 0, %s113
      %s117 = sphi 0, %s116
      %s133 = sphi 0, %s117
    $region4: #{tpu_custom_call.1} parent=1 // loop_header_branch
      %17 = sbr.rel (%p15) target = $region8
    $region5: #{tpu_custom_call.1} parent=1 // loop_body
      %s19 = ssub.s32 %s14, 1
      %s20 = ssub.s32 %s14, 2
      %s21 = sadd.s32 %s14, 1
      %s23 = sadd.s32 %s22, 1
      %p26 = scmp.eq.s32.totalorder %s14, 1
      %p27 = scmp.ne.s32.totalorder %s22, %s24
      %p28 = scmp.eq.s32.totalorder %s14, 0
      %p29 = por %p27, %p28
      %p30 = scmp.ne.s32.totalorder %s22, %s24
      %p31 = scmp.eq.s32.totalorder %s19, 1
      %p32 = por %p30, %p31
      %p33 = scmp.ne.s32.totalorder %s24, %s25
      %p34 = scmp.eq.s32.totalorder %s19, 0
      %p35 = por %p33, %p34
      %p36 = scmp.ne.s32.totalorder %s24, %s25
      %p37 = scmp.eq.s32.totalorder %s20, 1
      %p38 = por %p36, %p37
      %p40 = scmp.ne.s32.totalorder %s25, %s39
      %p41 = scmp.eq.s32.totalorder %s20, 0
      %p42 = por %p40, %p41
      %s44 = sadd.s32 %s43, 1
      %p47 = scmp.eq.s32.totalorder %s14, 1
      %p48 = scmp.ne.s32.totalorder %s43, %s45
      %p49 = scmp.eq.s32.totalorder %s14, 0
      %p50 = por %p48, %p49
      %p51 = scmp.ne.s32.totalorder %s43, %s45
      %p52 = scmp.eq.s32.totalorder %s19, 1
      %p53 = por %p51, %p52
      %p54 = scmp.ne.s32.totalorder %s45, %s46
      %p55 = scmp.eq.s32.totalorder %s19, 0
      %p56 = por %p54, %p55
      %p57 = scmp.ne.s32.totalorder %s45, %s46
      %p58 = scmp.eq.s32.totalorder %s20, 1
      %p59 = por %p57, %p58
      %p61 = scmp.ne.s32.totalorder %s46, %s60
      %p62 = scmp.eq.s32.totalorder %s20, 0
      %p63 = por %p61, %p62
      %s65 = sadd.s32 %s64, 1
      %p68 = scmp.eq.s32.totalorder %s14, 1
      %p69 = scmp.ne.s32.totalorder %s64, %s66
      %p70 = scmp.eq.s32.totalorder %s14, 0
      %p71 = por %p69, %p70
      %p72 = scmp.ne.s32.totalorder %s64, %s66
      %p73 = scmp.eq.s32.totalorder %s19, 1
      %p74 = por %p72, %p73
      %p75 = scmp.ne.s32.totalorder %s66, %s67
      %p76 = scmp.eq.s32.totalorder %s19, 0
      %p77 = por %p75, %p76
      %p78 = scmp.ne.s32.totalorder %s66, %s67
      %p79 = scmp.eq.s32.totalorder %s20, 1
      %p80 = por %p78, %p79
      %p82 = scmp.ne.s32.totalorder %s67, %s81
      %p83 = scmp.eq.s32.totalorder %s20, 0
      %p84 = por %p82, %p83
      %s85 = ssub.s32 %s14, %s21
      %p86 = scmp.eq.s32.totalorder %s85, 0
      %s88 = sadd.s32 %s87, 1
      %s89 = scalar_select %p86, %s87, %s88
      %p92 = pneg %p86
      %p93 = scmp.eq.s32.totalorder %s14, 1
      %p94 = por %p92, %p93
      %p95 = scmp.ne.s32.totalorder %s87, %s90
      %p96 = scmp.eq.s32.totalorder %s14, 0
      %p97 = por %p95, %p96
      %p98 = scmp.ne.s32.totalorder %s87, %s90
      %p99 = scmp.eq.s32.totalorder %s19, 1
      %p100 = por %p98, %p99
      %p101 = scmp.ne.s32.totalorder %s90, %s91
      %p102 = scmp.eq.s32.totalorder %s19, 0
      %p103 = por %p101, %p102
      %p104 = scmp.ne.s32.totalorder %s90, %s91
      %p105 = scmp.eq.s32.totalorder %s20, 1
      %p106 = por %p104, %p105
      %p108 = scmp.ne.s32.totalorder %s91, %s107
      %p109 = scmp.eq.s32.totalorder %s20, 0
      %p110 = por %p108, %p109
      %s111 = ssub.s32 %s14, %s21
      %p112 = scmp.eq.s32.totalorder %s111, 0
      %s114 = sadd.s32 %s113, 1
      %s115 = scalar_select %p112, %s113, %s114
      %p118 = pneg %p112
      %p119 = scmp.eq.s32.totalorder %s14, 1
      %p120 = por %p118, %p119
      %p121 = scmp.ne.s32.totalorder %s113, %s116
      %p122 = scmp.eq.s32.totalorder %s14, 0
      %p123 = por %p121, %p122
      %p124 = scmp.ne.s32.totalorder %s113, %s116
      %p125 = scmp.eq.s32.totalorder %s19, 1
      %p126 = por %p124, %p125
      %p127 = scmp.ne.s32.totalorder %s116, %s117
      %p128 = scmp.eq.s32.totalorder %s19, 0
      %p129 = por %p127, %p128
      %p130 = scmp.ne.s32.totalorder %s116, %s117
      %p131 = scmp.eq.s32.totalorder %s20, 1
      %p132 = por %p130, %p131
      %p134 = scmp.ne.s32.totalorder %s117, %s133
      %p135 = scmp.eq.s32.totalorder %s20, 0
      %p136 = por %p134, %p135
      %p137 = scmp.le.s32.totalorder 1, %s14
      %p138 = scmp.lt.s32.totalorder %s14, 3
      %p139 = pnand %p137, %p138
      %p140 = pneg %p139
      // Predicated region
      $region9: #{tpu_custom_call.1} parent=5 // pred_check
        _
      $region10: #{tpu_custom_call.1} parent=5 // pred_check_branch
        %142 = sbr.rel (%p139) target = $region12
      $region11: #{tpu_custom_call.1} parent=5 // pred_region
        %s143 = ssub.s32 %s14, 1
        // Predicated region
        $region13: #{tpu_custom_call.1} parent=11 // pred_check
          %p144 = pneg %p35
        $region14: #{tpu_custom_call.1} parent=11 // pred_check_branch
          %146 = sbr.rel (%p144) target = $region16
        $region15: #{tpu_custom_call.1} parent=11 // pred_region
          %s148 = ssub.s32 16, 16
          %149 = vsyncadd [#allocation4], %s148
          %s151 = sshll.u32 %s0, 4
          %s152 = int_to_ptr.vmem [resolvable:$true] %s151
          %154 = dma.vmem_to_smem %s152, 16, [#allocation2], [#allocation4]
        $region16: #{tpu_custom_call.1} parent=11 // pred_fallthru
          _
        // Predicated region
        $region17: #{tpu_custom_call.1} parent=11 // pred_check
          %p155 = pneg %p56
        $region18: #{tpu_custom_call.1} parent=11 // pred_check_branch
          %157 = sbr.rel (%p155) target = $region20
        $region19: #{tpu_custom_call.1} parent=11 // pred_region
          _
        $region20: #{tpu_custom_call.1} parent=11 // pred_fallthru
          _
        // Predicated region
        $region21: #{tpu_custom_call.1} parent=11 // pred_check
          %p158 = pneg %p77
        $region22: #{tpu_custom_call.1} parent=11 // pred_check_branch
          %160 = sbr.rel (%p158) target = $region24
        $region23: #{tpu_custom_call.1} parent=11 // pred_region
          _
        $region24: #{tpu_custom_call.1} parent=11 // pred_fallthru
          _
      $region12: #{tpu_custom_call.1} parent=5 // pred_fallthru
        _
      %p161 = scmp.lt.s32.totalorder %s14, 2
      // Predicated region
      $region25: #{tpu_custom_call.1} parent=5 // pred_check
        %p162 = pneg %p161
      $region26: #{tpu_custom_call.1} parent=5 // pred_check_branch
        %164 = sbr.rel (%p162) target = $region28
      $region27: #{tpu_custom_call.1} parent=5 // pred_region
        // Predicated region
        $region29: #{tpu_custom_call.1} parent=27 // pred_check
          %p165 = pneg %p97
        $region30: #{tpu_custom_call.1} parent=27 // pred_check_branch
          %167 = sbr.rel (%p165) target = $region32
        $region31: #{tpu_custom_call.1} parent=27 // pred_region
          %s168 = sand.u32 %s87, 1
          %s169 = sand.u32 %s87, 1
          %s170 = smul.addr %s169, 96
          %s171 = scalar_lea.vmem [#allocation5], %s170
          %s172 = smul.u32 3, %s14
          %s173 = smul.addr %s172, 8
          %s174 = scalar_lea.vmem %s3, %s173
          // Predicated region
          $region33: #{tpu_custom_call.1} parent=31 // pred_check
            _
          $region34: #{tpu_custom_call.1} parent=31 // pred_check_branch
            %176 = sbr.rel (0) target = $region36
          $region35: #{tpu_custom_call.1} parent=31 // pred_region
            // Predicated region
            $region37: #{tpu_custom_call.1} parent=35 // pred_check
              _
            $region38: #{tpu_custom_call.1} parent=35 // pred_check_branch
              %178 = sbr.rel (0) target = $region40
            $region39: #{tpu_custom_call.1} parent=35 // pred_region
              loop: start=0, step=1, limit=1
              $region41: #{tpu_custom_call.1} parent=39 // loop_pre_header
                _
              $region42: #{tpu_custom_call.1} parent=39 // loop_header
                %s180 = sphi 0, %s184
                %p181 = scmp.ge.s32.totalorder %s180, 1
                %s185 = sphi %s174, %s174
                %s186 = sphi %s171, %s171
              $region43: #{tpu_custom_call.1} parent=39 // loop_header_branch
                %183 = sbr.rel (%p181) target = $region47
              $region44: #{tpu_custom_call.1} parent=39 // loop_body
                %v187 = vld [vmem:[%s185] sm:$0xff]
                %188 = vst [vmem:[%s186] sm:$0xff] %v187
                %v189 = vld [vmem:[%s185 + $0x8] sm:$0xff]
                %190 = vst [vmem:[%s186 + $0x8] sm:$0xff] %v189
                %v191 = vld [vmem:[%s185 + $0x10] sm:$0xff]
                %192 = vst [vmem:[%s186 + $0x10] sm:$0xff] %v191
                %v193 = vld [vmem:[%s185 + $0x30] sm:$0xff]
                %194 = vst [vmem:[%s186 + $0x18] sm:$0xff] %v193
                %v195 = vld [vmem:[%s185 + $0x38] sm:$0xff]
                %196 = vst [vmem:[%s186 + $0x20] sm:$0xff] %v195
                %v197 = vld [vmem:[%s185 + $0x40] sm:$0xff]
                %198 = vst [vmem:[%s186 + $0x28] sm:$0xff] %v197
                %v199 = vld [vmem:[%s185 + $0x60] sm:$0xff]
                %200 = vst [vmem:[%s186 + $0x30] sm:$0xff] %v199
                %v201 = vld [vmem:[%s185 + $0x68] sm:$0xff]
                %202 = vst [vmem:[%s186 + $0x38] sm:$0xff] %v201
                %v203 = vld [vmem:[%s185 + $0x70] sm:$0xff]
                %204 = vst [vmem:[%s186 + $0x40] sm:$0xff] %v203
                %v205 = vld [vmem:[%s185 + $0x90] sm:$0xff]
                %206 = vst [vmem:[%s186 + $0x48] sm:$0xff] %v205
                %v207 = vld [vmem:[%s185 + $0x98] sm:$0xff]
                %208 = vst [vmem:[%s186 + $0x50] sm:$0xff] %v207
                %v209 = vld [vmem:[%s185 + $0xa0] sm:$0xff]
                %210 = vst [vmem:[%s186 + $0x58] sm:$0xff] %v209
              $region45: #{tpu_custom_call.1} parent=39 // loop_footer
                %s184 = sadd.s32 1, %s180
              $region46: #{tpu_custom_call.1} parent=39 // loop_footer_branch
                %179 = sbr.rel target = $region42
              $region47: #{tpu_custom_call.1} parent=39 // loop_exit
                _
            $region40: #{tpu_custom_call.1} parent=35 // pred_fallthru
              _
            // Predicated region
            $region48: #{tpu_custom_call.1} parent=35 // pred_check
              _
            $region49: #{tpu_custom_call.1} parent=35 // pred_check_branch
              %212 = sbr.rel target = $region51
            $region50: #{tpu_custom_call.1} parent=35 // pred_region
              _
            $region51: #{tpu_custom_call.1} parent=35 // pred_fallthru
              _
          $region36: #{tpu_custom_call.1} parent=31 // pred_fallthru
            _
          %213 = vnop
        $region32: #{tpu_custom_call.1} parent=27 // pred_fallthru
          _
      $region28: #{tpu_custom_call.1} parent=5 // pred_fallthru
        _
      %p214 = scmp.le.s32.totalorder 1, %s14
      %p215 = scmp.lt.s32.totalorder %s14, 3
      %p216 = pnand %p214, %p215
      %p217 = pneg %p216
      // Predicated region
      $region52: #{tpu_custom_call.1} parent=5 // pred_check
        _
      $region53: #{tpu_custom_call.1} parent=5 // pred_check_branch
        %219 = sbr.rel (%p216) target = $region55
      $region54: #{tpu_custom_call.1} parent=5 // pred_region
        %s220 = ssub.s32 %s14, 1
        // Predicated region
        $region56: #{tpu_custom_call.1} parent=54 // pred_check
          %p221 = pneg %p35
        $region57: #{tpu_custom_call.1} parent=54 // pred_check_branch
          %223 = sbr.rel (%p221) target = $region59
        $region58: #{tpu_custom_call.1} parent=54 // pred_region
          %224 = dma.done [#allocation4], 16
        $region59: #{tpu_custom_call.1} parent=54 // pred_fallthru
          _
        %s225 = sand.u32 %s90, 1
        %s226 = sand.u32 %s90, 1
        %s227 = smul.addr %s226, 96
        %s228 = scalar_lea.vmem [#allocation5], %s227
        // Predicated region
        $region60: #{tpu_custom_call.1} parent=54 // pred_check
          %p229 = pneg %p103
        $region61: #{tpu_custom_call.1} parent=54 // pred_check_branch
          %231 = sbr.rel (%p229) target = $region63
        $region62: #{tpu_custom_call.1} parent=54 // pred_region
          _
        $region63: #{tpu_custom_call.1} parent=54 // pred_fallthru
          _
        %232 = sfence
        %p233 = pneg %p35
        %p234 = pneg %p32
        %p235 = pneg %p56
        %p236 = pneg %p53
        %p237 = pneg %p77
        %p238 = pneg %p74
        %s239 = sand.u32 %s90, 1
        %s240 = sand.u32 %s90, 1
        %s241 = smul.addr %s240, 96
        %s242 = scalar_lea.vmem [#allocation5], %s241
        %p243 = pneg %p103
        %p244 = pneg %p100
        %p245 = pneg %p129
        %p246 = pneg %p126
        %s247 = sand.u32 %s116, 1
        %s248 = scalar_lea.sflag [#allocation3], %s247
        %s249 = sand.u32 %s116, 1
        %s250 = scalar_lea.vmem [#allocation6], %s249
        %s251 = smul.u32 3, %s19
        %v252 = vld [vmem:[%s1] sm:$0xff]
        %v253 = vld [vmem:[%s1 + $0x8] sm:$0xff]
        %v254 = vld [vmem:[%s1 + $0x10] sm:$0xff]
        %v255 = vld [vmem:[%s1 + $0x18] sm:$0xff]
        %v256 = vld [vmem:[%s228] sm:$0xff]
        %v257 = vld [vmem:[%s228 + $0x8] sm:$0xff]
        %v258 = vld [vmem:[%s228 + $0x10] sm:$0xff]
        %v259 = vld [vmem:[%s228 + $0x18] sm:$0xff]
        %v260 = vld [vmem:[%s228 + $0x20] sm:$0xff]
        %v261 = vld [vmem:[%s228 + $0x28] sm:$0xff]
        %v262 = vld [vmem:[%s228 + $0x30] sm:$0xff]
        %v263 = vld [vmem:[%s228 + $0x38] sm:$0xff]
        %v264 = vld [vmem:[%s228 + $0x40] sm:$0xff]
        %v265 = vld [vmem:[%s228 + $0x48] sm:$0xff]
        %v266 = vld [vmem:[%s228 + $0x50] sm:$0xff]
        %v267 = vld [vmem:[%s228 + $0x58] sm:$0xff]
        %vm268 = vcmask 261120
        %v270 = vsel %vm268, %v252, 0
        %v273 = vsel %vm268, %v253, 0
        %v276 = vsel %vm268, %v254, 0
        %v279 = vsel %vm268, %v255, 0
        %281 = vmatprep.subr.mxu0 %v257
        %282 = vmatpush1.msra.mxu0 %v256
        %283 = vmatprep.subr.mxu0 %v260
        %284 = vmatpush1.msra.mxu0 %v259
        %285 = vmatprep.subr.mxu0 %v263
        %286 = vmatpush1.msra.mxu0 %v262
        %287 = vmatprep.subr.mxu0 %v266
        %288 = vmatpush1.msra.mxu0 %v265
        %289 = vmatprep.subr.mxu0 0.0
        %290 = vmatpush1.msra.mxu0 0.0
        %291 = vmatprep.subr.mxu0 0.0
        %292 = vmatpush1.msra.mxu0 0.0
        %293 = vmatprep.subr.mxu0 0.0
        %294 = vmatpush1.msra.mxu0 0.0
        %295 = vmatprep.subr.mxu0 0.0
        %296 = vmatpush1.msra.mxu0 0.0
        %297 = vmatprep.subr.mxu0 0.0
        %298 = vmatpush1.msra.mxu0 0.0
        %299 = vmatprep.subr.mxu0 0.0
        %300 = vmatpush1.msra.mxu0 0.0
        %301 = vmatprep.subr.mxu0 0.0
        %302 = vmatpush1.msra.mxu0 0.0
        %303 = vmatprep.subr.mxu0 0.0
        %304 = vmatpush1.msra.mxu0 0.0
        %305 = vmatprep.subr.mxu0 0.0
        %306 = vmatpush1.msra.mxu0 0.0
        %307 = vmatprep.subr.mxu0 0.0
        %308 = vmatpush1.msra.mxu0 0.0
        %309 = vmatprep.subr.mxu0 0.0
        %310 = vmatpush1.msra.mxu0 0.0
        %311 = vmatprep.subr.mxu0 0.0
        %312 = vmatpush1.msra.mxu0 0.0
        %313 = vmatprep.subr.mxu0 0.0
        %314 = vmatpush1.msra.mxu0 0.0
        %315 = vmatprep.subr.mxu0 0.0
        %316 = vmatpush1.msra.mxu0 0.0
        %317 = vmatprep.subr.mxu0 0.0
        %318 = vmatpush1.msra.mxu0 0.0
        %319 = vmatprep.subr.mxu0 0.0
        %320 = vmatpush1.msra.mxu0 0.0
        %321 = vmatprep.subr.mxu0 0.0
        %322 = vmatpush1.msra.mxu0 0.0
        %323 = vmatprep.subr.mxu0 0.0
        %324 = vmatpush1.msra.mxu0 0.0
        %325 = vmatprep.subr.mxu0 0.0
        %326 = vmatpush1.msra.mxu0 0.0
        %327 = vmatprep.subr.mxu0 0.0
        %328 = vmatpush1.msra.mxu0 0.0
        %329 = vmatprep.subr.mxu0 0.0
        %330 = vmatpush1.msra.mxu0 0.0
        %331 = vmatprep.subr.mxu0 0.0
        %332 = vmatpush1.msra.mxu0 0.0
        %333 = vmatprep.subr.mxu0 0.0
        %334 = vmatpush1.msra.mxu0 0.0
        %335 = vmatprep.subr.mxu0 0.0
        %336 = vmatpush1.msra.mxu0 0.0
        %337 = vmatprep.subr.mxu0 0.0
        %338 = vmatpush1.msra.mxu0 0.0
        %339 = vmatprep.subr.mxu0 0.0
        %340 = vmatpush1.msra.mxu0 0.0
        %341 = vmatprep.subr.mxu0 0.0
        %342 = vmatpush1.msra.mxu0 0.0
        %343 = vmatprep.subr.mxu0 0.0
        %344 = vmatpush1.msra.mxu0 0.0
        %345 = vmatprep.mubr.f32.mxu0 0.0
        %346 = vmatmul.mubr.f32.gmra.mrb[0].mxu0 %v270
        %v347 = vpop.f32.mrb[0].mxu0
        %v348 = vadd.f32 0.0, %v347
        %v349 = vpop.f32.mrb[0].mxu0
        %v350 = vadd.f32 0.0, %v349
        %351 = vmatprep.mubr.f32.mxu0 0.0
        %352 = vmatmul.mubr.f32.gmra.mrb[0].mxu0 %v273
        %v353 = vpop.f32.mrb[0].mxu0
        %v354 = vadd.f32 0.0, %v353
        %v355 = vpop.f32.mrb[0].mxu0
        %v356 = vadd.f32 0.0, %v355
        %357 = vmatprep.mubr.f32.mxu0 0.0
        %358 = vmatmul.mubr.f32.gmra.mrb[0].mxu0 %v276
        %v359 = vpop.f32.mrb[0].mxu0
        %v360 = vadd.f32 0.0, %v359
        %v361 = vpop.f32.mrb[0].mxu0
        %v362 = vadd.f32 0.0, %v361
        %363 = vmatprep.mubr.f32.mxu0 0.0
        %364 = vmatmul.mubr.f32.gmra.mrb[0].mxu0 %v279
        %v365 = vpop.f32.mrb[0].mxu0
        %v366 = vadd.f32 0.0, %v365
        %v367 = vpop.f32.mrb[0].mxu0
        %v368 = vadd.f32 0.0, %v367
        %369 = vdwg.mxu0
        %370 = vmatprep.subr.mxu0 0.0
        %371 = vmatpush1.msra.mxu0 %v258
        %372 = vmatprep.subr.mxu0 0.0
        %373 = vmatpush1.msra.mxu0 %v261
        %374 = vmatprep.subr.mxu0 0.0
        %375 = vmatpush1.msra.mxu0 %v264
        %376 = vmatprep.subr.mxu0 0.0
        %377 = vmatpush1.msra.mxu0 %v267
        %378 = vmatprep.subr.mxu0 0.0
        %379 = vmatpush1.msra.mxu0 0.0
        %380 = vmatprep.subr.mxu0 0.0
        %381 = vmatpush1.msra.mxu0 0.0
        %382 = vmatprep.subr.mxu0 0.0
        %383 = vmatpush1.msra.mxu0 0.0
        %384 = vmatprep.subr.mxu0 0.0
        %385 = vmatpush1.msra.mxu0 0.0
        %386 = vmatprep.subr.mxu0 0.0
        %387 = vmatpush1.msra.mxu0 0.0
        %388 = vmatprep.subr.mxu0 0.0
        %389 = vmatpush1.msra.mxu0 0.0
        %390 = vmatprep.subr.mxu0 0.0
        %391 = vmatpush1.msra.mxu0 0.0
        %392 = vmatprep.subr.mxu0 0.0
        %393 = vmatpush1.msra.mxu0 0.0
        %394 = vmatprep.subr.mxu0 0.0
        %395 = vmatpush1.msra.mxu0 0.0
        %396 = vmatprep.subr.mxu0 0.0
        %397 = vmatpush1.msra.mxu0 0.0
        %398 = vmatprep.subr.mxu0 0.0
        %399 = vmatpush1.msra.mxu0 0.0
        %400 = vmatprep.subr.mxu0 0.0
        %401 = vmatpush1.msra.mxu0 0.0
        %402 = vmatprep.subr.mxu0 0.0
        %403 = vmatpush1.msra.mxu0 0.0
        %404 = vmatprep.subr.mxu0 0.0
        %405 = vmatpush1.msra.mxu0 0.0
        %406 = vmatprep.subr.mxu0 0.0
        %407 = vmatpush1.msra.mxu0 0.0
        %408 = vmatprep.subr.mxu0 0.0
        %409 = vmatpush1.msra.mxu0 0.0
        %410 = vmatprep.subr.mxu0 0.0
        %411 = vmatpush1.msra.mxu0 0.0
        %412 = vmatprep.subr.mxu0 0.0
        %413 = vmatpush1.msra.mxu0 0.0
        %414 = vmatprep.subr.mxu0 0.0
        %415 = vmatpush1.msra.mxu0 0.0
        %416 = vmatprep.subr.mxu0 0.0
        %417 = vmatpush1.msra.mxu0 0.0
        %418 = vmatprep.subr.mxu0 0.0
        %419 = vmatpush1.msra.mxu0 0.0
        %420 = vmatprep.subr.mxu0 0.0
        %421 = vmatpush1.msra.mxu0 0.0
        %422 = vmatprep.subr.mxu0 0.0
        %423 = vmatpush1.msra.mxu0 0.0
        %424 = vmatprep.subr.mxu0 0.0
        %425 = vmatpush1.msra.mxu0 0.0
        %426 = vmatprep.subr.mxu0 0.0
        %427 = vmatpush1.msra.mxu0 0.0
        %428 = vmatprep.subr.mxu0 0.0
        %429 = vmatpush1.msra.mxu0 0.0
        %430 = vmatprep.subr.mxu0 0.0
        %431 = vmatpush1.msra.mxu0 0.0
        %432 = vmatprep.subr.mxu0 0.0
        %433 = vmatpush1.msra.mxu0 0.0
        %434 = vmatprep.mubr.f32.mxu0 0.0
        %435 = vmatmul.mubr.f32.gmra.mrb[0].mxu0 %v270
        %v436 = vpop.f32.mrb[0].mxu0
        %v437 = vadd.f32 0.0, %v436
        %v438 = vpop.f32.mrb[0].mxu0
        %439 = vmatprep.mubr.f32.mxu0 0.0
        %440 = vmatmul.mubr.f32.gmra.mrb[0].mxu0 %v273
        %v441 = vpop.f32.mrb[0].mxu0
        %v442 = vadd.f32 0.0, %v441
        %v443 = vpop.f32.mrb[0].mxu0
        %444 = vmatprep.mubr.f32.mxu0 0.0
        %445 = vmatmul.mubr.f32.gmra.mrb[0].mxu0 %v276
        %v446 = vpop.f32.mrb[0].mxu0
        %v447 = vadd.f32 0.0, %v446
        %v448 = vpop.f32.mrb[0].mxu0
        %449 = vmatprep.mubr.f32.mxu0 0.0
        %450 = vmatmul.mubr.f32.gmra.mrb[0].mxu0 %v279
        %v451 = vpop.f32.mrb[0].mxu0
        %v452 = vadd.f32 0.0, %v451
        %v453 = vpop.f32.mrb[0].mxu0
        %454 = vdwg.mxu0
        %s455 = sld [smem:[#allocation2]]
        %v456 = vstv %s455
        %v457 = vmul.f32 %v348, %v456
        %v458 = vmul.f32 %v354, %v456
        %v459 = vmul.f32 %v360, %v456
        %v460 = vmul.f32 %v366, %v456
        %s461 = sld [smem:[#allocation2 + $0x10]]
        %v462 = vstv %s461
        %v463 = vmul.f32 %v350, %v462
        %v464 = vmul.f32 %v356, %v462
        %v465 = vmul.f32 %v362, %v462
        %v466 = vmul.f32 %v368, %v462
        %v467 = vadd.f32 %v457, %v463
        %v468 = vadd.f32 %v458, %v464
        %v469 = vadd.f32 %v459, %v465
        %v470 = vadd.f32 %v460, %v466
        %s471 = sld [smem:[#allocation2 + $0x20]]
        %v472 = vstv %s471
        %v473 = vmul.f32 %v437, %v472
        %v474 = vmul.f32 %v442, %v472
        %v475 = vmul.f32 %v447, %v472
        %v476 = vmul.f32 %v452, %v472
        %v477 = vadd.f32 %v467, %v473
        %v478 = vadd.f32 %v468, %v474
        %v479 = vadd.f32 %v469, %v475
        %v480 = vadd.f32 %v470, %v476
        %s481 = sld [smem:[#allocation2 + $0x30]]
        %v482 = vstv %s481
        %v483 = vadd.f32 %v477, %v482
        %v484 = vadd.f32 %v478, %v482
        %v485 = vadd.f32 %v479, %v482
        %v486 = vadd.f32 %v480, %v482
        %v487 = vmax.f32 %v483, 0.0
        %v488 = vmax.f32 %v484, 0.0
        %v489 = vmax.f32 %v485, 0.0
        %v490 = vmax.f32 %v486, 0.0
        %s491 = sld [smem:[#allocation2 + $0x40]]
        %v492 = vstv %s491
        %v493 = vmul.f32 %v487, %v492
        %v494 = vmul.f32 %v488, %v492
        %v495 = vmul.f32 %v489, %v492
        %v496 = vmul.f32 %v490, %v492
        %s497 = sld [smem:[#allocation2 + $0x1]]
        %v498 = vstv %s497
        %v499 = vmul.f32 %v348, %v498
        %v500 = vmul.f32 %v354, %v498
        %v501 = vmul.f32 %v360, %v498
        %v502 = vmul.f32 %v366, %v498
        %s503 = sld [smem:[#allocation2 + $0x11]]
        %v504 = vstv %s503
        %v505 = vmul.f32 %v350, %v504
        %v506 = vmul.f32 %v356, %v504
        %v507 = vmul.f32 %v362, %v504
        %v508 = vmul.f32 %v368, %v504
        %v509 = vadd.f32 %v499, %v505
        %v510 = vadd.f32 %v500, %v506
        %v511 = vadd.f32 %v501, %v507
        %v512 = vadd.f32 %v502, %v508
        %s513 = sld [smem:[#allocation2 + $0x21]]
        %v514 = vstv %s513
        %v515 = vmul.f32 %v437, %v514
        %v516 = vmul.f32 %v442, %v514
        %v517 = vmul.f32 %v447, %v514
        %v518 = vmul.f32 %v452, %v514
        %v519 = vadd.f32 %v509, %v515
        %v520 = vadd.f32 %v510, %v516
        %v521 = vadd.f32 %v511, %v517
        %v522 = vadd.f32 %v512, %v518
        %s523 = sld [smem:[#allocation2 + $0x31]]
        %v524 = vstv %s523
        %v525 = vadd.f32 %v519, %v524
        %v526 = vadd.f32 %v520, %v524
        %v527 = vadd.f32 %v521, %v524
        %v528 = vadd.f32 %v522, %v524
        %v529 = vmax.f32 %v525, 0.0
        %v530 = vmax.f32 %v526, 0.0
        %v531 = vmax.f32 %v527, 0.0
        %v532 = vmax.f32 %v528, 0.0
        %s533 = sld [smem:[#allocation2 + $0x41]]
        %v534 = vstv %s533
        %v535 = vmul.f32 %v529, %v534
        %v536 = vmul.f32 %v530, %v534
        %v537 = vmul.f32 %v531, %v534
        %v538 = vmul.f32 %v532, %v534
        %v539 = vadd.f32 %v493, %v535
        %v540 = vadd.f32 %v494, %v536
        %v541 = vadd.f32 %v495, %v537
        %v542 = vadd.f32 %v496, %v538
        %s543 = sld [smem:[#allocation2 + $0x2]]
        %v544 = vstv %s543
        %v545 = vmul.f32 %v348, %v544
        %v546 = vmul.f32 %v354, %v544
        %v547 = vmul.f32 %v360, %v544
        %v548 = vmul.f32 %v366, %v544
        %s549 = sld [smem:[#allocation2 + $0x12]]
        %v550 = vstv %s549
        %v551 = vmul.f32 %v350, %v550
        %v552 = vmul.f32 %v356, %v550
        %v553 = vmul.f32 %v362, %v550
        %v554 = vmul.f32 %v368, %v550
        %v555 = vadd.f32 %v545, %v551
        %v556 = vadd.f32 %v546, %v552
        %v557 = vadd.f32 %v547, %v553
        %v558 = vadd.f32 %v548, %v554
        %s559 = sld [smem:[#allocation2 + $0x22]]
        %v560 = vstv %s559
        %v561 = vmul.f32 %v437, %v560
        %v562 = vmul.f32 %v442, %v560
        %v563 = vmul.f32 %v447, %v560
        %v564 = vmul.f32 %v452, %v560
        %v565 = vadd.f32 %v555, %v561
        %v566 = vadd.f32 %v556, %v562
        %v567 = vadd.f32 %v557, %v563
        %v568 = vadd.f32 %v558, %v564
        %s569 = sld [smem:[#allocation2 + $0x32]]
        %v570 = vstv %s569
        %v571 = vadd.f32 %v565, %v570
        %v572 = vadd.f32 %v566, %v570
        %v573 = vadd.f32 %v567, %v570
        %v574 = vadd.f32 %v568, %v570
        %v575 = vmax.f32 %v571, 0.0
        %v576 = vmax.f32 %v572, 0.0
        %v577 = vmax.f32 %v573, 0.0
        %v578 = vmax.f32 %v574, 0.0
        %s579 = sld [smem:[#allocation2 + $0x42]]
        %v580 = vstv %s579
        %v581 = vmul.f32 %v575, %v580
        %v582 = vmul.f32 %v576, %v580
        %v583 = vmul.f32 %v577, %v580
        %v584 = vmul.f32 %v578, %v580
        %v585 = vadd.f32 %v539, %v581
        %v586 = vadd.f32 %v540, %v582
        %v587 = vadd.f32 %v541, %v583
        %v588 = vadd.f32 %v542, %v584
        %s589 = sld [smem:[#allocation2 + $0x3]]
        %v590 = vstv %s589
        %v591 = vmul.f32 %v348, %v590
        %v592 = vmul.f32 %v354, %v590
        %v593 = vmul.f32 %v360, %v590
        %v594 = vmul.f32 %v366, %v590
        %s595 = sld [smem:[#allocation2 + $0x13]]
        %v596 = vstv %s595
        %v597 = vmul.f32 %v350, %v596
        %v598 = vmul.f32 %v356, %v596
        %v599 = vmul.f32 %v362, %v596
        %v600 = vmul.f32 %v368, %v596
        %v601 = vadd.f32 %v591, %v597
        %v602 = vadd.f32 %v592, %v598
        %v603 = vadd.f32 %v593, %v599
        %v604 = vadd.f32 %v594, %v600
        %s605 = sld [smem:[#allocation2 + $0x23]]
        %v606 = vstv %s605
        %v607 = vmul.f32 %v437, %v606
        %v608 = vmul.f32 %v442, %v606
        %v609 = vmul.f32 %v447, %v606
        %v610 = vmul.f32 %v452, %v606
        %v611 = vadd.f32 %v601, %v607
        %v612 = vadd.f32 %v602, %v608
        %v613 = vadd.f32 %v603, %v609
        %v614 = vadd.f32 %v604, %v610
        %s615 = sld [smem:[#allocation2 + $0x33]]
        %v616 = vstv %s615
        %v617 = vadd.f32 %v611, %v616
        %v618 = vadd.f32 %v612, %v616
        %v619 = vadd.f32 %v613, %v616
        %v620 = vadd.f32 %v614, %v616
        %v621 = vmax.f32 %v617, 0.0
        %v622 = vmax.f32 %v618, 0.0
        %v623 = vmax.f32 %v619, 0.0
        %v624 = vmax.f32 %v620, 0.0
        %s625 = sld [smem:[#allocation2 + $0x43]]
        %v626 = vstv %s625
        %v627 = vmul.f32 %v621, %v626
        %v628 = vmul.f32 %v622, %v626
        %v629 = vmul.f32 %v623, %v626
        %v630 = vmul.f32 %v624, %v626
        %v631 = vadd.f32 %v585, %v627
        %v632 = vadd.f32 %v586, %v628
        %v633 = vadd.f32 %v587, %v629
        %v634 = vadd.f32 %v588, %v630
        %s635 = sld [smem:[#allocation2 + $0x4]]
        %v636 = vstv %s635
        %v637 = vmul.f32 %v348, %v636
        %v638 = vmul.f32 %v354, %v636
        %v639 = vmul.f32 %v360, %v636
        %v640 = vmul.f32 %v366, %v636
        %s641 = sld [smem:[#allocation2 + $0x14]]
        %v642 = vstv %s641
        %v643 = vmul.f32 %v350, %v642
        %v644 = vmul.f32 %v356, %v642
        %v645 = vmul.f32 %v362, %v642
        %v646 = vmul.f32 %v368, %v642
        %v647 = vadd.f32 %v637, %v643
        %v648 = vadd.f32 %v638, %v644
        %v649 = vadd.f32 %v639, %v645
        %v650 = vadd.f32 %v640, %v646
        %s651 = sld [smem:[#allocation2 + $0x24]]
        %v652 = vstv %s651
        %v653 = vmul.f32 %v437, %v652
        %v654 = vmul.f32 %v442, %v652
        %v655 = vmul.f32 %v447, %v652
        %v656 = vmul.f32 %v452, %v652
        %v657 = vadd.f32 %v647, %v653
        %v658 = vadd.f32 %v648, %v654
        %v659 = vadd.f32 %v649, %v655
        %v660 = vadd.f32 %v650, %v656
        %s661 = sld [smem:[#allocation2 + $0x34]]
        %v662 = vstv %s661
        %v663 = vadd.f32 %v657, %v662
        %v664 = vadd.f32 %v658, %v662
        %v665 = vadd.f32 %v659, %v662
        %v666 = vadd.f32 %v660, %v662
        %v667 = vmax.f32 %v663, 0.0
        %v668 = vmax.f32 %v664, 0.0
        %v669 = vmax.f32 %v665, 0.0
        %v670 = vmax.f32 %v666, 0.0
        %s671 = sld [smem:[#allocation2 + $0x44]]
        %v672 = vstv %s671
        %v673 = vmul.f32 %v667, %v672
        %v674 = vmul.f32 %v668, %v672
        %v675 = vmul.f32 %v669, %v672
        %v676 = vmul.f32 %v670, %v672
        %v677 = vadd.f32 %v631, %v673
        %v678 = vadd.f32 %v632, %v674
        %v679 = vadd.f32 %v633, %v675
        %v680 = vadd.f32 %v634, %v676
        %s681 = sld [smem:[#allocation2 + $0x5]]
        %v682 = vstv %s681
        %v683 = vmul.f32 %v348, %v682
        %v684 = vmul.f32 %v354, %v682
        %v685 = vmul.f32 %v360, %v682
        %v686 = vmul.f32 %v366, %v682
        %s687 = sld [smem:[#allocation2 + $0x15]]
        %v688 = vstv %s687
        %v689 = vmul.f32 %v350, %v688
        %v690 = vmul.f32 %v356, %v688
        %v691 = vmul.f32 %v362, %v688
        %v692 = vmul.f32 %v368, %v688
        %v693 = vadd.f32 %v683, %v689
        %v694 = vadd.f32 %v684, %v690
        %v695 = vadd.f32 %v685, %v691
        %v696 = vadd.f32 %v686, %v692
        %s697 = sld [smem:[#allocation2 + $0x25]]
        %v698 = vstv %s697
        %v699 = vmul.f32 %v437, %v698
        %v700 = vmul.f32 %v442, %v698
        %v701 = vmul.f32 %v447, %v698
        %v702 = vmul.f32 %v452, %v698
        %v703 = vadd.f32 %v693, %v699
        %v704 = vadd.f32 %v694, %v700
        %v705 = vadd.f32 %v695, %v701
        %v706 = vadd.f32 %v696, %v702
        %s707 = sld [smem:[#allocation2 + $0x35]]
        %v708 = vstv %s707
        %v709 = vadd.f32 %v703, %v708
        %v710 = vadd.f32 %v704, %v708
        %v711 = vadd.f32 %v705, %v708
        %v712 = vadd.f32 %v706, %v708
        %v713 = vmax.f32 %v709, 0.0
        %v714 = vmax.f32 %v710, 0.0
        %v715 = vmax.f32 %v711, 0.0
        %v716 = vmax.f32 %v712, 0.0
        %s717 = sld [smem:[#allocation2 + $0x45]]
        %v718 = vstv %s717
        %v719 = vmul.f32 %v713, %v718
        %v720 = vmul.f32 %v714, %v718
        %v721 = vmul.f32 %v715, %v718
        %v722 = vmul.f32 %v716, %v718
        %v723 = vadd.f32 %v677, %v719
        %v724 = vadd.f32 %v678, %v720
        %v725 = vadd.f32 %v679, %v721
        %v726 = vadd.f32 %v680, %v722
        %s727 = sld [smem:[#allocation2 + $0x6]]
        %v728 = vstv %s727
        %v729 = vmul.f32 %v348, %v728
        %v730 = vmul.f32 %v354, %v728
        %v731 = vmul.f32 %v360, %v728
        %v732 = vmul.f32 %v366, %v728
        %s733 = sld [smem:[#allocation2 + $0x16]]
        %v734 = vstv %s733
        %v735 = vmul.f32 %v350, %v734
        %v736 = vmul.f32 %v356, %v734
        %v737 = vmul.f32 %v362, %v734
        %v738 = vmul.f32 %v368, %v734
        %v739 = vadd.f32 %v729, %v735
        %v740 = vadd.f32 %v730, %v736
        %v741 = vadd.f32 %v731, %v737
        %v742 = vadd.f32 %v732, %v738
        %s743 = sld [smem:[#allocation2 + $0x26]]
        %v744 = vstv %s743
        %v745 = vmul.f32 %v437, %v744
        %v746 = vmul.f32 %v442, %v744
        %v747 = vmul.f32 %v447, %v744
        %v748 = vmul.f32 %v452, %v744
        %v749 = vadd.f32 %v739, %v745
        %v750 = vadd.f32 %v740, %v746
        %v751 = vadd.f32 %v741, %v747
        %v752 = vadd.f32 %v742, %v748
        %s753 = sld [smem:[#allocation2 + $0x36]]
        %v754 = vstv %s753
        %v755 = vadd.f32 %v749, %v754
        %v756 = vadd.f32 %v750, %v754
        %v757 = vadd.f32 %v751, %v754
        %v758 = vadd.f32 %v752, %v754
        %v759 = vmax.f32 %v755, 0.0
        %v760 = vmax.f32 %v756, 0.0
        %v761 = vmax.f32 %v757, 0.0
        %v762 = vmax.f32 %v758, 0.0
        %s763 = sld [smem:[#allocation2 + $0x46]]
        %v764 = vstv %s763
        %v765 = vmul.f32 %v759, %v764
        %v766 = vmul.f32 %v760, %v764
        %v767 = vmul.f32 %v761, %v764
        %v768 = vmul.f32 %v762, %v764
        %v769 = vadd.f32 %v723, %v765
        %v770 = vadd.f32 %v724, %v766
        %v771 = vadd.f32 %v725, %v767
        %v772 = vadd.f32 %v726, %v768
        %s773 = sld [smem:[#allocation2 + $0x7]]
        %v774 = vstv %s773
        %v775 = vmul.f32 %v348, %v774
        %v776 = vmul.f32 %v354, %v774
        %v777 = vmul.f32 %v360, %v774
        %v778 = vmul.f32 %v366, %v774
        %s779 = sld [smem:[#allocation2 + $0x17]]
        %v780 = vstv %s779
        %v781 = vmul.f32 %v350, %v780
        %v782 = vmul.f32 %v356, %v780
        %v783 = vmul.f32 %v362, %v780
        %v784 = vmul.f32 %v368, %v780
        %v785 = vadd.f32 %v775, %v781
        %v786 = vadd.f32 %v776, %v782
        %v787 = vadd.f32 %v777, %v783
        %v788 = vadd.f32 %v778, %v784
        %s789 = sld [smem:[#allocation2 + $0x27]]
        %v790 = vstv %s789
        %v791 = vmul.f32 %v437, %v790
        %v792 = vmul.f32 %v442, %v790
        %v793 = vmul.f32 %v447, %v790
        %v794 = vmul.f32 %v452, %v790
        %v795 = vadd.f32 %v785, %v791
        %v796 = vadd.f32 %v786, %v792
        %v797 = vadd.f32 %v787, %v793
        %v798 = vadd.f32 %v788, %v794
        %s799 = sld [smem:[#allocation2 + $0x37]]
        %v800 = vstv %s799
        %v801 = vadd.f32 %v795, %v800
        %v802 = vadd.f32 %v796, %v800
        %v803 = vadd.f32 %v797, %v800
        %v804 = vadd.f32 %v798, %v800
        %v805 = vmax.f32 %v801, 0.0
        %v806 = vmax.f32 %v802, 0.0
        %v807 = vmax.f32 %v803, 0.0
        %v808 = vmax.f32 %v804, 0.0
        %s809 = sld [smem:[#allocation2 + $0x47]]
        %v810 = vstv %s809
        %v811 = vmul.f32 %v805, %v810
        %v812 = vmul.f32 %v806, %v810
        %v813 = vmul.f32 %v807, %v810
        %v814 = vmul.f32 %v808, %v810
        %v815 = vadd.f32 %v769, %v811
        %v816 = vadd.f32 %v770, %v812
        %v817 = vadd.f32 %v771, %v813
        %v818 = vadd.f32 %v772, %v814
        %s819 = sld [smem:[#allocation2 + $0x8]]
        %v820 = vstv %s819
        %v821 = vmul.f32 %v348, %v820
        %v822 = vmul.f32 %v354, %v820
        %v823 = vmul.f32 %v360, %v820
        %v824 = vmul.f32 %v366, %v820
        %s825 = sld [smem:[#allocation2 + $0x18]]
        %v826 = vstv %s825
        %v827 = vmul.f32 %v350, %v826
        %v828 = vmul.f32 %v356, %v826
        %v829 = vmul.f32 %v362, %v826
        %v830 = vmul.f32 %v368, %v826
        %v831 = vadd.f32 %v821, %v827
        %v832 = vadd.f32 %v822, %v828
        %v833 = vadd.f32 %v823, %v829
        %v834 = vadd.f32 %v824, %v830
        %s835 = sld [smem:[#allocation2 + $0x28]]
        %v836 = vstv %s835
        %v837 = vmul.f32 %v437, %v836
        %v838 = vmul.f32 %v442, %v836
        %v839 = vmul.f32 %v447, %v836
        %v840 = vmul.f32 %v452, %v836
        %v841 = vadd.f32 %v831, %v837
        %v842 = vadd.f32 %v832, %v838
        %v843 = vadd.f32 %v833, %v839
        %v844 = vadd.f32 %v834, %v840
        %s845 = sld [smem:[#allocation2 + $0x38]]
        %v846 = vstv %s845
        %v847 = vadd.f32 %v841, %v846
        %v848 = vadd.f32 %v842, %v846
        %v849 = vadd.f32 %v843, %v846
        %v850 = vadd.f32 %v844, %v846
        %v851 = vmax.f32 %v847, 0.0
        %v852 = vmax.f32 %v848, 0.0
        %v853 = vmax.f32 %v849, 0.0
        %v854 = vmax.f32 %v850, 0.0
        %s855 = sld [smem:[#allocation2 + $0x48]]
        %v856 = vstv %s855
        %v857 = vmul.f32 %v851, %v856
        %v858 = vmul.f32 %v852, %v856
        %v859 = vmul.f32 %v853, %v856
        %v860 = vmul.f32 %v854, %v856
        %v861 = vadd.f32 %v815, %v857
        %v862 = vadd.f32 %v816, %v858
        %v863 = vadd.f32 %v817, %v859
        %v864 = vadd.f32 %v818, %v860
        %s865 = sld [smem:[#allocation2 + $0x9]]
        %v866 = vstv %s865
        %v867 = vmul.f32 %v348, %v866
        %v868 = vmul.f32 %v354, %v866
        %v869 = vmul.f32 %v360, %v866
        %v870 = vmul.f32 %v366, %v866
        %s871 = sld [smem:[#allocation2 + $0x19]]
        %v872 = vstv %s871
        %v873 = vmul.f32 %v350, %v872
        %v874 = vmul.f32 %v356, %v872
        %v875 = vmul.f32 %v362, %v872
        %v876 = vmul.f32 %v368, %v872
        %v877 = vadd.f32 %v867, %v873
        %v878 = vadd.f32 %v868, %v874
        %v879 = vadd.f32 %v869, %v875
        %v880 = vadd.f32 %v870, %v876
        %s881 = sld [smem:[#allocation2 + $0x29]]
        %v882 = vstv %s881
        %v883 = vmul.f32 %v437, %v882
        %v884 = vmul.f32 %v442, %v882
        %v885 = vmul.f32 %v447, %v882
        %v886 = vmul.f32 %v452, %v882
        %v887 = vadd.f32 %v877, %v883
        %v888 = vadd.f32 %v878, %v884
        %v889 = vadd.f32 %v879, %v885
        %v890 = vadd.f32 %v880, %v886
        %s891 = sld [smem:[#allocation2 + $0x39]]
        %v892 = vstv %s891
        %v893 = vadd.f32 %v887, %v892
        %v894 = vadd.f32 %v888, %v892
        %v895 = vadd.f32 %v889, %v892
        %v896 = vadd.f32 %v890, %v892
        %v897 = vmax.f32 %v893, 0.0
        %v898 = vmax.f32 %v894, 0.0
        %v899 = vmax.f32 %v895, 0.0
        %v900 = vmax.f32 %v896, 0.0
        %s901 = sld [smem:[#allocation2 + $0x49]]
        %v902 = vstv %s901
        %v903 = vmul.f32 %v897, %v902
        %v904 = vmul.f32 %v898, %v902
        %v905 = vmul.f32 %v899, %v902
        %v906 = vmul.f32 %v900, %v902
        %v907 = vadd.f32 %v861, %v903
        %v908 = vadd.f32 %v862, %v904
        %v909 = vadd.f32 %v863, %v905
        %v910 = vadd.f32 %v864, %v906
        %s911 = sld [smem:[#allocation2 + $0xa]]
        %v912 = vstv %s911
        %v913 = vmul.f32 %v348, %v912
        %v914 = vmul.f32 %v354, %v912
        %v915 = vmul.f32 %v360, %v912
        %v916 = vmul.f32 %v366, %v912
        %s917 = sld [smem:[#allocation2 + $0x1a]]
        %v918 = vstv %s917
        %v919 = vmul.f32 %v350, %v918
        %v920 = vmul.f32 %v356, %v918
        %v921 = vmul.f32 %v362, %v918
        %v922 = vmul.f32 %v368, %v918
        %v923 = vadd.f32 %v913, %v919
        %v924 = vadd.f32 %v914, %v920
        %v925 = vadd.f32 %v915, %v921
        %v926 = vadd.f32 %v916, %v922
        %s927 = sld [smem:[#allocation2 + $0x2a]]
        %v928 = vstv %s927
        %v929 = vmul.f32 %v437, %v928
        %v930 = vmul.f32 %v442, %v928
        %v931 = vmul.f32 %v447, %v928
        %v932 = vmul.f32 %v452, %v928
        %v933 = vadd.f32 %v923, %v929
        %v934 = vadd.f32 %v924, %v930
        %v935 = vadd.f32 %v925, %v931
        %v936 = vadd.f32 %v926, %v932
        %s937 = sld [smem:[#allocation2 + $0x3a]]
        %v938 = vstv %s937
        %v939 = vadd.f32 %v933, %v938
        %v940 = vadd.f32 %v934, %v938
        %v941 = vadd.f32 %v935, %v938
        %v942 = vadd.f32 %v936, %v938
        %v943 = vmax.f32 %v939, 0.0
        %v944 = vmax.f32 %v940, 0.0
        %v945 = vmax.f32 %v941, 0.0
        %v946 = vmax.f32 %v942, 0.0
        %s947 = sld [smem:[#allocation2 + $0x4a]]
        %v948 = vstv %s947
        %v949 = vmul.f32 %v943, %v948
        %v950 = vmul.f32 %v944, %v948
        %v951 = vmul.f32 %v945, %v948
        %v952 = vmul.f32 %v946, %v948
        %v953 = vadd.f32 %v907, %v949
        %v954 = vadd.f32 %v908, %v950
        %v955 = vadd.f32 %v909, %v951
        %v956 = vadd.f32 %v910, %v952
        %s957 = sld [smem:[#allocation2 + $0xb]]
        %v958 = vstv %s957
        %v959 = vmul.f32 %v348, %v958
        %v960 = vmul.f32 %v354, %v958
        %v961 = vmul.f32 %v360, %v958
        %v962 = vmul.f32 %v366, %v958
        %s963 = sld [smem:[#allocation2 + $0x1b]]
        %v964 = vstv %s963
        %v965 = vmul.f32 %v350, %v964
        %v966 = vmul.f32 %v356, %v964
        %v967 = vmul.f32 %v362, %v964
        %v968 = vmul.f32 %v368, %v964
        %v969 = vadd.f32 %v959, %v965
        %v970 = vadd.f32 %v960, %v966
        %v971 = vadd.f32 %v961, %v967
        %v972 = vadd.f32 %v962, %v968
        %s973 = sld [smem:[#allocation2 + $0x2b]]
        %v974 = vstv %s973
        %v975 = vmul.f32 %v437, %v974
        %v976 = vmul.f32 %v442, %v974
        %v977 = vmul.f32 %v447, %v974
        %v978 = vmul.f32 %v452, %v974
        %v979 = vadd.f32 %v969, %v975
        %v980 = vadd.f32 %v970, %v976
        %v981 = vadd.f32 %v971, %v977
        %v982 = vadd.f32 %v972, %v978
        %s983 = sld [smem:[#allocation2 + $0x3b]]
        %v984 = vstv %s983
        %v985 = vadd.f32 %v979, %v984
        %v986 = vadd.f32 %v980, %v984
        %v987 = vadd.f32 %v981, %v984
        %v988 = vadd.f32 %v982, %v984
        %v989 = vmax.f32 %v985, 0.0
        %v990 = vmax.f32 %v986, 0.0
        %v991 = vmax.f32 %v987, 0.0
        %v992 = vmax.f32 %v988, 0.0
        %s993 = sld [smem:[#allocation2 + $0x4b]]
        %v994 = vstv %s993
        %v995 = vmul.f32 %v989, %v994
        %v996 = vmul.f32 %v990, %v994
        %v997 = vmul.f32 %v991, %v994
        %v998 = vmul.f32 %v992, %v994
        %v999 = vadd.f32 %v953, %v995
        %v1000 = vadd.f32 %v954, %v996
        %v1001 = vadd.f32 %v955, %v997
        %v1002 = vadd.f32 %v956, %v998
        %s1003 = sld [smem:[#allocation2 + $0xc]]
        %v1004 = vstv %s1003
        %v1005 = vmul.f32 %v348, %v1004
        %v1006 = vmul.f32 %v354, %v1004
        %v1007 = vmul.f32 %v360, %v1004
        %v1008 = vmul.f32 %v366, %v1004
        %s1009 = sld [smem:[#allocation2 + $0x1c]]
        %v1010 = vstv %s1009
        %v1011 = vmul.f32 %v350, %v1010
        %v1012 = vmul.f32 %v356, %v1010
        %v1013 = vmul.f32 %v362, %v1010
        %v1014 = vmul.f32 %v368, %v1010
        %v1015 = vadd.f32 %v1005, %v1011
        %v1016 = vadd.f32 %v1006, %v1012
        %v1017 = vadd.f32 %v1007, %v1013
        %v1018 = vadd.f32 %v1008, %v1014
        %s1019 = sld [smem:[#allocation2 + $0x2c]]
        %v1020 = vstv %s1019
        %v1021 = vmul.f32 %v437, %v1020
        %v1022 = vmul.f32 %v442, %v1020
        %v1023 = vmul.f32 %v447, %v1020
        %v1024 = vmul.f32 %v452, %v1020
        %v1025 = vadd.f32 %v1015, %v1021
        %v1026 = vadd.f32 %v1016, %v1022
        %v1027 = vadd.f32 %v1017, %v1023
        %v1028 = vadd.f32 %v1018, %v1024
        %s1029 = sld [smem:[#allocation2 + $0x3c]]
        %v1030 = vstv %s1029
        %v1031 = vadd.f32 %v1025, %v1030
        %v1032 = vadd.f32 %v1026, %v1030
        %v1033 = vadd.f32 %v1027, %v1030
        %v1034 = vadd.f32 %v1028, %v1030
        %v1035 = vmax.f32 %v1031, 0.0
        %v1036 = vmax.f32 %v1032, 0.0
        %v1037 = vmax.f32 %v1033, 0.0
        %v1038 = vmax.f32 %v1034, 0.0
        %s1039 = sld [smem:[#allocation2 + $0x4c]]
        %v1040 = vstv %s1039
        %v1041 = vmul.f32 %v1035, %v1040
        %v1042 = vmul.f32 %v1036, %v1040
        %v1043 = vmul.f32 %v1037, %v1040
        %v1044 = vmul.f32 %v1038, %v1040
        %v1045 = vadd.f32 %v999, %v1041
        %v1046 = vadd.f32 %v1000, %v1042
        %v1047 = vadd.f32 %v1001, %v1043
        %v1048 = vadd.f32 %v1002, %v1044
        %s1049 = sld [smem:[#allocation2 + $0xd]]
        %v1050 = vstv %s1049
        %v1051 = vmul.f32 %v348, %v1050
        %v1052 = vmul.f32 %v354, %v1050
        %v1053 = vmul.f32 %v360, %v1050
        %v1054 = vmul.f32 %v366, %v1050
        %s1055 = sld [smem:[#allocation2 + $0x1d]]
        %v1056 = vstv %s1055
        %v1057 = vmul.f32 %v350, %v1056
        %v1058 = vmul.f32 %v356, %v1056
        %v1059 = vmul.f32 %v362, %v1056
        %v1060 = vmul.f32 %v368, %v1056
        %v1061 = vadd.f32 %v1051, %v1057
        %v1062 = vadd.f32 %v1052, %v1058
        %v1063 = vadd.f32 %v1053, %v1059
        %v1064 = vadd.f32 %v1054, %v1060
        %s1065 = sld [smem:[#allocation2 + $0x2d]]
        %v1066 = vstv %s1065
        %v1067 = vmul.f32 %v437, %v1066
        %v1068 = vmul.f32 %v442, %v1066
        %v1069 = vmul.f32 %v447, %v1066
        %v1070 = vmul.f32 %v452, %v1066
        %v1071 = vadd.f32 %v1061, %v1067
        %v1072 = vadd.f32 %v1062, %v1068
        %v1073 = vadd.f32 %v1063, %v1069
        %v1074 = vadd.f32 %v1064, %v1070
        %s1075 = sld [smem:[#allocation2 + $0x3d]]
        %v1076 = vstv %s1075
        %v1077 = vadd.f32 %v1071, %v1076
        %v1078 = vadd.f32 %v1072, %v1076
        %v1079 = vadd.f32 %v1073, %v1076
        %v1080 = vadd.f32 %v1074, %v1076
        %v1081 = vmax.f32 %v1077, 0.0
        %v1082 = vmax.f32 %v1078, 0.0
        %v1083 = vmax.f32 %v1079, 0.0
        %v1084 = vmax.f32 %v1080, 0.0
        %s1085 = sld [smem:[#allocation2 + $0x4d]]
        %v1086 = vstv %s1085
        %v1087 = vmul.f32 %v1081, %v1086
        %v1088 = vmul.f32 %v1082, %v1086
        %v1089 = vmul.f32 %v1083, %v1086
        %v1090 = vmul.f32 %v1084, %v1086
        %v1091 = vadd.f32 %v1045, %v1087
        %v1092 = vadd.f32 %v1046, %v1088
        %v1093 = vadd.f32 %v1047, %v1089
        %v1094 = vadd.f32 %v1048, %v1090
        %s1095 = sld [smem:[#allocation2 + $0xe]]
        %v1096 = vstv %s1095
        %v1097 = vmul.f32 %v348, %v1096
        %v1098 = vmul.f32 %v354, %v1096
        %v1099 = vmul.f32 %v360, %v1096
        %v1100 = vmul.f32 %v366, %v1096
        %s1101 = sld [smem:[#allocation2 + $0x1e]]
        %v1102 = vstv %s1101
        %v1103 = vmul.f32 %v350, %v1102
        %v1104 = vmul.f32 %v356, %v1102
        %v1105 = vmul.f32 %v362, %v1102
        %v1106 = vmul.f32 %v368, %v1102
        %v1107 = vadd.f32 %v1097, %v1103
        %v1108 = vadd.f32 %v1098, %v1104
        %v1109 = vadd.f32 %v1099, %v1105
        %v1110 = vadd.f32 %v1100, %v1106
        %s1111 = sld [smem:[#allocation2 + $0x2e]]
        %v1112 = vstv %s1111
        %v1113 = vmul.f32 %v437, %v1112
        %v1114 = vmul.f32 %v442, %v1112
        %v1115 = vmul.f32 %v447, %v1112
        %v1116 = vmul.f32 %v452, %v1112
        %v1117 = vadd.f32 %v1107, %v1113
        %v1118 = vadd.f32 %v1108, %v1114
        %v1119 = vadd.f32 %v1109, %v1115
        %v1120 = vadd.f32 %v1110, %v1116
        %s1121 = sld [smem:[#allocation2 + $0x3e]]
        %v1122 = vstv %s1121
        %v1123 = vadd.f32 %v1117, %v1122
        %v1124 = vadd.f32 %v1118, %v1122
        %v1125 = vadd.f32 %v1119, %v1122
        %v1126 = vadd.f32 %v1120, %v1122
        %v1127 = vmax.f32 %v1123, 0.0
        %v1128 = vmax.f32 %v1124, 0.0
        %v1129 = vmax.f32 %v1125, 0.0
        %v1130 = vmax.f32 %v1126, 0.0
        %s1131 = sld [smem:[#allocation2 + $0x4e]]
        %v1132 = vstv %s1131
        %v1133 = vmul.f32 %v1127, %v1132
        %v1134 = vmul.f32 %v1128, %v1132
        %v1135 = vmul.f32 %v1129, %v1132
        %v1136 = vmul.f32 %v1130, %v1132
        %v1137 = vadd.f32 %v1091, %v1133
        %v1138 = vadd.f32 %v1092, %v1134
        %v1139 = vadd.f32 %v1093, %v1135
        %v1140 = vadd.f32 %v1094, %v1136
        %s1141 = sld [smem:[#allocation2 + $0xf]]
        %v1142 = vstv %s1141
        %v1143 = vmul.f32 %v348, %v1142
        %v1144 = vmul.f32 %v354, %v1142
        %v1145 = vmul.f32 %v360, %v1142
        %v1146 = vmul.f32 %v366, %v1142
        %s1147 = sld [smem:[#allocation2 + $0x1f]]
        %v1148 = vstv %s1147
        %v1149 = vmul.f32 %v350, %v1148
        %v1150 = vmul.f32 %v356, %v1148
        %v1151 = vmul.f32 %v362, %v1148
        %v1152 = vmul.f32 %v368, %v1148
        %v1153 = vadd.f32 %v1143, %v1149
        %v1154 = vadd.f32 %v1144, %v1150
        %v1155 = vadd.f32 %v1145, %v1151
        %v1156 = vadd.f32 %v1146, %v1152
        %s1157 = sld [smem:[#allocation2 + $0x2f]]
        %v1158 = vstv %s1157
        %v1159 = vmul.f32 %v437, %v1158
        %v1160 = vmul.f32 %v442, %v1158
        %v1161 = vmul.f32 %v447, %v1158
        %v1162 = vmul.f32 %v452, %v1158
        %v1163 = vadd.f32 %v1153, %v1159
        %v1164 = vadd.f32 %v1154, %v1160
        %v1165 = vadd.f32 %v1155, %v1161
        %v1166 = vadd.f32 %v1156, %v1162
        %s1167 = sld [smem:[#allocation2 + $0x3f]]
        %v1168 = vstv %s1167
        %v1169 = vadd.f32 %v1163, %v1168
        %v1170 = vadd.f32 %v1164, %v1168
        %v1171 = vadd.f32 %v1165, %v1168
        %v1172 = vadd.f32 %v1166, %v1168
        %v1173 = vmax.f32 %v1169, 0.0
        %v1174 = vmax.f32 %v1170, 0.0
        %v1175 = vmax.f32 %v1171, 0.0
        %v1176 = vmax.f32 %v1172, 0.0
        %s1177 = sld [smem:[#allocation2 + $0x4f]]
        %v1178 = vstv %s1177
        %v1179 = vmul.f32 %v1173, %v1178
        %v1180 = vmul.f32 %v1174, %v1178
        %v1181 = vmul.f32 %v1175, %v1178
        %v1182 = vmul.f32 %v1176, %v1178
        %v1183 = vadd.f32 %v1137, %v1179
        %v1184 = vadd.f32 %v1138, %v1180
        %v1185 = vadd.f32 %v1139, %v1181
        %v1186 = vadd.f32 %v1140, %v1182
        %s1187 = sld [smem:[#allocation2 + $0x50]]
        %v1188 = vstv %s1187
        %1189 = vmatprep.subr.mxu0 0.0
        %1190 = vmatpush1.msra.mxu0 %v1183
        %1191 = vmatprep.subr.mxu0 0.0
        %1192 = vmatpush1.msra.mxu0 %v1184
        %1193 = vmatprep.subr.mxu0 0.0
        %1194 = vmatpush1.msra.mxu0 %v1185
        %1195 = vmatprep.subr.mxu0 0.0
        %1196 = vmatpush1.msra.mxu0 %v1186
        %1197 = vmatprep.subr.mxu0 0.0
        %1198 = vmatpush1.msra.mxu0 0.0
        %1199 = vmatprep.subr.mxu0 0.0
        %1200 = vmatpush1.msra.mxu0 0.0
        %1201 = vmatprep.subr.mxu0 0.0
        %1202 = vmatpush1.msra.mxu0 0.0
        %1203 = vmatprep.subr.mxu0 0.0
        %1204 = vmatpush1.msra.mxu0 0.0
        %1205 = vmatprep.subr.mxu0 0.0
        %1206 = vmatpush1.msra.mxu0 0.0
        %1207 = vmatprep.subr.mxu0 0.0
        %1208 = vmatpush1.msra.mxu0 0.0
        %1209 = vmatprep.subr.mxu0 0.0
        %1210 = vmatpush1.msra.mxu0 0.0
        %1211 = vmatprep.subr.mxu0 0.0
        %1212 = vmatpush1.msra.mxu0 0.0
        %1213 = vmatprep.subr.mxu0 0.0
        %1214 = vmatpush1.msra.mxu0 0.0
        %1215 = vmatprep.subr.mxu0 0.0
        %1216 = vmatpush1.msra.mxu0 0.0
        %1217 = vmatprep.subr.mxu0 0.0
        %1218 = vmatpush1.msra.mxu0 0.0
        %1219 = vmatprep.subr.mxu0 0.0
        %1220 = vmatpush1.msra.mxu0 0.0
        %1221 = vmatprep.subr.mxu0 0.0
        %1222 = vmatpush1.msra.mxu0 0.0
        %1223 = vmatprep.subr.mxu0 0.0
        %1224 = vmatpush1.msra.mxu0 0.0
        %1225 = vmatprep.subr.mxu0 0.0
        %1226 = vmatpush1.msra.mxu0 0.0
        %1227 = vmatprep.subr.mxu0 0.0
        %1228 = vmatpush1.msra.mxu0 0.0
        %1229 = vmatprep.subr.mxu0 0.0
        %1230 = vmatpush1.msra.mxu0 0.0
        %1231 = vmatprep.subr.mxu0 0.0
        %1232 = vmatpush1.msra.mxu0 0.0
        %1233 = vmatprep.subr.mxu0 0.0
        %1234 = vmatpush1.msra.mxu0 0.0
        %1235 = vmatprep.subr.mxu0 0.0
        %1236 = vmatpush1.msra.mxu0 0.0
        %1237 = vmatprep.subr.mxu0 0.0
        %1238 = vmatpush1.msra.mxu0 0.0
        %1239 = vmatprep.subr.mxu0 0.0
        %1240 = vmatpush1.msra.mxu0 0.0
        %1241 = vmatprep.subr.mxu0 0.0
        %1242 = vmatpush1.msra.mxu0 0.0
        %1243 = vmatprep.subr.mxu0 0.0
        %1244 = vmatpush1.msra.mxu0 0.0
        %1245 = vmatprep.subr.mxu0 0.0
        %1246 = vmatpush1.msra.mxu0 0.0
        %1247 = vmatprep.subr.mxu0 0.0
        %1248 = vmatpush1.msra.mxu0 0.0
        %1249 = vmatprep.subr.mxu0 0.0
        %1250 = vmatpush1.msra.mxu0 0.0
        %1251 = vmatprep.subr.mxu0 0.0
        %1252 = vmatpush1.msra.mxu0 0.0
        %1253 = vmatprep.mubr.f32.mxu0 0.0
        %1254 = vmatmul.mubr.f32.gmra.mrb[0].mxu0 %v270
        %v1255 = vpop.f32.mrb[0].mxu0
        %v1256 = vadd.f32 %v1188, %v1255
        %v1257 = vpop.f32.mrb[0].mxu0
        %1258 = vmatprep.mubr.f32.mxu0 0.0
        %1259 = vmatmul.mubr.f32.gmra.mrb[0].mxu0 %v273
        %v1260 = vpop.f32.mrb[0].mxu0
        %v1261 = vadd.f32 %v1188, %v1260
        %v1262 = vpop.f32.mrb[0].mxu0
        %1263 = vmatprep.mubr.f32.mxu0 0.0
        %1264 = vmatmul.mubr.f32.gmra.mrb[0].mxu0 %v276
        %v1265 = vpop.f32.mrb[0].mxu0
        %v1266 = vadd.f32 %v1188, %v1265
        %v1267 = vpop.f32.mrb[0].mxu0
        %1268 = vmatprep.mubr.f32.mxu0 0.0
        %1269 = vmatmul.mubr.f32.gmra.mrb[0].mxu0 %v279
        %v1270 = vpop.f32.mrb[0].mxu0
        %v1271 = vadd.f32 %v1188, %v1270
        %v1272 = vpop.f32.mrb[0].mxu0
        %1273 = vdwg.mxu0
        %v1274 = vmax.f32 %v1256, 0.0
        %v1275 = vmax.f32 %v1261, 0.0
        %v1276 = vmax.f32 %v1266, 0.0
        %v1277 = vmax.f32 %v1271, 0.0
        %v1278 = vld [vmem:[%s2] sm:$0xff]
        %v1279 = vld [vmem:[%s2 + $0x8] sm:$0xff]
        %v1280 = vld [vmem:[%s2 + $0x10] sm:$0xff]
        %v1281 = vld [vmem:[%s2 + $0x18] sm:$0xff]
        %v1282 = vld [vmem:[%s2 + $0x40] sm:$0xff]
        %v1283 = vld [vmem:[%s2 + $0x48] sm:$0xff]
        %v1284 = vld [vmem:[%s2 + $0x50] sm:$0xff]
        %v1285 = vld [vmem:[%s2 + $0x58] sm:$0xff]
        %1287 = vset.pattern.permute.xlu0 0
        %1288 = vperm.xlu0 %1287, %v1282
        %v1289 = vpop.permute.xlu0 %1288
        %1292 = vset.pattern.permute.xlu0 0
        %1293 = vperm.xlu0 %1292, %v1283
        %v1294 = vpop.permute.xlu0 %1293
        %1297 = vset.pattern.permute.xlu0 0
        %1298 = vperm.xlu0 %1297, %v1284
        %v1299 = vpop.permute.xlu0 %1298
        %1302 = vset.pattern.permute.xlu0 0
        %1303 = vperm.xlu0 %1302, %v1285
        %v1304 = vpop.permute.xlu0 %1303
        %v1307 = vsel %vm268, %v1278, 0
        %v1310 = vsel %vm268, %v1279, 0
        %v1313 = vsel %vm268, %v1280, 0
        %v1316 = vsel %vm268, %v1281, 0
        %1318 = vmatprep.subr.mxu0 0.0
        %1319 = vmatpush1.msra.mxu0 %v1274
        %1320 = vmatprep.subr.mxu0 0.0
        %1321 = vmatpush1.msra.mxu0 %v1275
        %1322 = vmatprep.subr.mxu0 0.0
        %1323 = vmatpush1.msra.mxu0 %v1276
        %1324 = vmatprep.subr.mxu0 0.0
        %1325 = vmatpush1.msra.mxu0 %v1277
        %1326 = vmatprep.subr.mxu0 0.0
        %1327 = vmatpush1.msra.mxu0 0.0
        %1328 = vmatprep.subr.mxu0 0.0
        %1329 = vmatpush1.msra.mxu0 0.0
        %1330 = vmatprep.subr.mxu0 0.0
        %1331 = vmatpush1.msra.mxu0 0.0
        %1332 = vmatprep.subr.mxu0 0.0
        %1333 = vmatpush1.msra.mxu0 0.0
        %1334 = vmatprep.subr.mxu0 0.0
        %1335 = vmatpush1.msra.mxu0 0.0
        %1336 = vmatprep.subr.mxu0 0.0
        %1337 = vmatpush1.msra.mxu0 0.0
        %1338 = vmatprep.subr.mxu0 0.0
        %1339 = vmatpush1.msra.mxu0 0.0
        %1340 = vmatprep.subr.mxu0 0.0
        %1341 = vmatpush1.msra.mxu0 0.0
        %1342 = vmatprep.subr.mxu0 0.0
        %1343 = vmatpush1.msra.mxu0 0.0
        %1344 = vmatprep.subr.mxu0 0.0
        %1345 = vmatpush1.msra.mxu0 0.0
        %1346 = vmatprep.subr.mxu0 0.0
        %1347 = vmatpush1.msra.mxu0 0.0
        %1348 = vmatprep.subr.mxu0 0.0
        %1349 = vmatpush1.msra.mxu0 0.0
        %1350 = vmatprep.subr.mxu0 0.0
        %1351 = vmatpush1.msra.mxu0 0.0
        %1352 = vmatprep.subr.mxu0 0.0
        %1353 = vmatpush1.msra.mxu0 0.0
        %1354 = vmatprep.subr.mxu0 0.0
        %1355 = vmatpush1.msra.mxu0 0.0
        %1356 = vmatprep.subr.mxu0 0.0
        %1357 = vmatpush1.msra.mxu0 0.0
        %1358 = vmatprep.subr.mxu0 0.0
        %1359 = vmatpush1.msra.mxu0 0.0
        %1360 = vmatprep.subr.mxu0 0.0
        %1361 = vmatpush1.msra.mxu0 0.0
        %1362 = vmatprep.subr.mxu0 0.0
        %1363 = vmatpush1.msra.mxu0 0.0
        %1364 = vmatprep.subr.mxu0 0.0
        %1365 = vmatpush1.msra.mxu0 0.0
        %1366 = vmatprep.subr.mxu0 0.0
        %1367 = vmatpush1.msra.mxu0 0.0
        %1368 = vmatprep.subr.mxu0 0.0
        %1369 = vmatpush1.msra.mxu0 0.0
        %1370 = vmatprep.subr.mxu0 0.0
        %1371 = vmatpush1.msra.mxu0 0.0
        %1372 = vmatprep.subr.mxu0 0.0
        %1373 = vmatpush1.msra.mxu0 0.0
        %1374 = vmatprep.subr.mxu0 0.0
        %1375 = vmatpush1.msra.mxu0 0.0
        %1376 = vmatprep.subr.mxu0 0.0
        %1377 = vmatpush1.msra.mxu0 0.0
        %1378 = vmatprep.subr.mxu0 0.0
        %1379 = vmatpush1.msra.mxu0 0.0
        %1380 = vmatprep.subr.mxu0 0.0
        %1381 = vmatpush1.msra.mxu0 0.0
        %1382 = vmatprep.mubr.f32.mxu0 0.0
        %1383 = vmatmul.mubr.f32.gmra.mrb[0].mxu0 %v1307
        %v1384 = vpop.f32.mrb[0].mxu0
        %v1385 = vadd.f32 %v1289, %v1384
        %v1386 = vpop.f32.mrb[0].mxu0
        %1387 = vmatprep.mubr.f32.mxu0 0.0
        %1388 = vmatmul.mubr.f32.gmra.mrb[0].mxu0 %v1310
        %v1389 = vpop.f32.mrb[0].mxu0
        %v1390 = vadd.f32 %v1294, %v1389
        %v1391 = vpop.f32.mrb[0].mxu0
        %1392 = vmatprep.mubr.f32.mxu0 0.0
        %1393 = vmatmul.mubr.f32.gmra.mrb[0].mxu0 %v1313
        %v1394 = vpop.f32.mrb[0].mxu0
        %v1395 = vadd.f32 %v1299, %v1394
        %v1396 = vpop.f32.mrb[0].mxu0
        %1397 = vmatprep.mubr.f32.mxu0 0.0
        %1398 = vmatmul.mubr.f32.gmra.mrb[0].mxu0 %v1316
        %v1399 = vpop.f32.mrb[0].mxu0
        %v1400 = vadd.f32 %v1304, %v1399
        %v1401 = vpop.f32.mrb[0].mxu0
        %1402 = vdwg.mxu0
        %v1403 = vtanh.pop %v1385
        %v1404 = vtanh.pop %v1390
        %v1405 = vtanh.pop %v1395
        %v1406 = vtanh.pop %v1400
        %v1407 = vld [vmem:[%s2 + $0x20] sm:$0xff]
        %v1408 = vld [vmem:[%s2 + $0x28] sm:$0xff]
        %v1409 = vld [vmem:[%s2 + $0x30] sm:$0xff]
        %v1410 = vld [vmem:[%s2 + $0x38] sm:$0xff]
        %v1411 = vld [vmem:[%s2 + $0x60] sm:$0xff]
        %v1412 = vld [vmem:[%s2 + $0x68] sm:$0xff]
        %v1413 = vld [vmem:[%s2 + $0x70] sm:$0xff]
        %v1414 = vld [vmem:[%s2 + $0x78] sm:$0xff]
        %1416 = vset.pattern.permute.xlu0 0
        %1417 = vperm.xlu0 %1416, %v1411
        %v1418 = vpop.permute.xlu0 %1417
        %1421 = vset.pattern.permute.xlu0 0
        %1422 = vperm.xlu0 %1421, %v1412
        %v1423 = vpop.permute.xlu0 %1422
        %1426 = vset.pattern.permute.xlu0 0
        %1427 = vperm.xlu0 %1426, %v1413
        %v1428 = vpop.permute.xlu0 %1427
        %1431 = vset.pattern.permute.xlu0 0
        %1432 = vperm.xlu0 %1431, %v1414
        %v1433 = vpop.permute.xlu0 %1432
        %v1436 = vsel %vm268, %v1407, 0
        %v1439 = vsel %vm268, %v1408, 0
        %v1442 = vsel %vm268, %v1409, 0
        %v1445 = vsel %vm268, %v1410, 0
        %1447 = vmatprep.subr.mxu0 0.0
        %1448 = vmatpush1.msra.mxu0 %v1403
        %1449 = vmatprep.subr.mxu0 0.0
        %1450 = vmatpush1.msra.mxu0 %v1404
        %1451 = vmatprep.subr.mxu0 0.0
        %1452 = vmatpush1.msra.mxu0 %v1405
        %1453 = vmatprep.subr.mxu0 0.0
        %1454 = vmatpush1.msra.mxu0 %v1406
        %1455 = vmatprep.subr.mxu0 0.0
        %1456 = vmatpush1.msra.mxu0 0.0
        %1457 = vmatprep.subr.mxu0 0.0
        %1458 = vmatpush1.msra.mxu0 0.0
        %1459 = vmatprep.subr.mxu0 0.0
        %1460 = vmatpush1.msra.mxu0 0.0
        %1461 = vmatprep.subr.mxu0 0.0
        %1462 = vmatpush1.msra.mxu0 0.0
        %1463 = vmatprep.subr.mxu0 0.0
        %1464 = vmatpush1.msra.mxu0 0.0
        %1465 = vmatprep.subr.mxu0 0.0
        %1466 = vmatpush1.msra.mxu0 0.0
        %1467 = vmatprep.subr.mxu0 0.0
        %1468 = vmatpush1.msra.mxu0 0.0
        %1469 = vmatprep.subr.mxu0 0.0
        %1470 = vmatpush1.msra.mxu0 0.0
        %1471 = vmatprep.subr.mxu0 0.0
        %1472 = vmatpush1.msra.mxu0 0.0
        %1473 = vmatprep.subr.mxu0 0.0
        %1474 = vmatpush1.msra.mxu0 0.0
        %1475 = vmatprep.subr.mxu0 0.0
        %1476 = vmatpush1.msra.mxu0 0.0
        %1477 = vmatprep.subr.mxu0 0.0
        %1478 = vmatpush1.msra.mxu0 0.0
        %1479 = vmatprep.subr.mxu0 0.0
        %1480 = vmatpush1.msra.mxu0 0.0
        %1481 = vmatprep.subr.mxu0 0.0
        %1482 = vmatpush1.msra.mxu0 0.0
        %1483 = vmatprep.subr.mxu0 0.0
        %1484 = vmatpush1.msra.mxu0 0.0
        %1485 = vmatprep.subr.mxu0 0.0
        %1486 = vmatpush1.msra.mxu0 0.0
        %1487 = vmatprep.subr.mxu0 0.0
        %1488 = vmatpush1.msra.mxu0 0.0
        %1489 = vmatprep.subr.mxu0 0.0
        %1490 = vmatpush1.msra.mxu0 0.0
        %1491 = vmatprep.subr.mxu0 0.0
        %1492 = vmatpush1.msra.mxu0 0.0
        %1493 = vmatprep.subr.mxu0 0.0
        %1494 = vmatpush1.msra.mxu0 0.0
        %1495 = vmatprep.subr.mxu0 0.0
        %1496 = vmatpush1.msra.mxu0 0.0
        %1497 = vmatprep.subr.mxu0 0.0
        %1498 = vmatpush1.msra.mxu0 0.0
        %1499 = vmatprep.subr.mxu0 0.0
        %1500 = vmatpush1.msra.mxu0 0.0
        %1501 = vmatprep.subr.mxu0 0.0
        %1502 = vmatpush1.msra.mxu0 0.0
        %1503 = vmatprep.subr.mxu0 0.0
        %1504 = vmatpush1.msra.mxu0 0.0
        %1505 = vmatprep.subr.mxu0 0.0
        %1506 = vmatpush1.msra.mxu0 0.0
        %1507 = vmatprep.subr.mxu0 0.0
        %1508 = vmatpush1.msra.mxu0 0.0
        %1509 = vmatprep.subr.mxu0 0.0
        %1510 = vmatpush1.msra.mxu0 0.0
        %1511 = vmatprep.mubr.f32.mxu0 0.0
        %1512 = vmatmul.mubr.f32.gmra.mrb[0].mxu0 %v1436
        %v1513 = vpop.f32.mrb[0].mxu0
        %v1514 = vadd.f32 %v1418, %v1513
        %v1515 = vpop.f32.mrb[0].mxu0
        %1516 = vmatprep.mubr.f32.mxu0 0.0
        %1517 = vmatmul.mubr.f32.gmra.mrb[0].mxu0 %v1439
        %v1518 = vpop.f32.mrb[0].mxu0
        %v1519 = vadd.f32 %v1423, %v1518
        %v1520 = vpop.f32.mrb[0].mxu0
        %1521 = vmatprep.mubr.f32.mxu0 0.0
        %1522 = vmatmul.mubr.f32.gmra.mrb[0].mxu0 %v1442
        %v1523 = vpop.f32.mrb[0].mxu0
        %v1524 = vadd.f32 %v1428, %v1523
        %v1525 = vpop.f32.mrb[0].mxu0
        %1526 = vmatprep.mubr.f32.mxu0 0.0
        %1527 = vmatmul.mubr.f32.gmra.mrb[0].mxu0 %v1445
        %v1528 = vpop.f32.mrb[0].mxu0
        %v1529 = vadd.f32 %v1433, %v1528
        %v1530 = vpop.f32.mrb[0].mxu0
        %1531 = vdwg.mxu0
        %v1532 = vtanh.pop %v1514
        %v1533 = vtanh.pop %v1519
        %v1534 = vtanh.pop %v1524
        %v1535 = vtanh.pop %v1529
        %v1536 = vld [vmem:[%s2 + $0x80] sm:$0xff]
        %v1537 = vld [vmem:[%s2 + $0x88] sm:$0xff]
        %v1538 = vld [vmem:[%s2 + $0x90] sm:$0xff]
        %v1539 = vld [vmem:[%s2 + $0x98] sm:$0xff]
        %1541 = vset.pattern.permute.xlu0 0
        %1542 = vperm.xlu0 %1541, %v1536
        %v1543 = vpop.permute.xlu0 %1542
        %1546 = vset.pattern.permute.xlu0 0
        %1547 = vperm.xlu0 %1546, %v1537
        %v1548 = vpop.permute.xlu0 %1547
        %1551 = vset.pattern.permute.xlu0 0
        %1552 = vperm.xlu0 %1551, %v1538
        %v1553 = vpop.permute.xlu0 %1552
        %1556 = vset.pattern.permute.xlu0 0
        %1557 = vperm.xlu0 %1556, %v1539
        %v1558 = vpop.permute.xlu0 %1557
        %v1560 = vmul.f32 %v1532, %v1543
        %v1561 = vmul.f32 %v1533, %v1548
        %v1562 = vmul.f32 %v1534, %v1553
        %v1563 = vmul.f32 %v1535, %v1558
        %v1564 = vadd.f32 %v1560, %v1561
        %v1565 = vadd.f32 %v1564, %v1562
        %v1566 = vadd.f32 %v1565, %v1563
        %v1567 = vrot.slane %v1566, 4
        %v1568 = vadd.f32 %v1566, %v1567
        %v1569 = vrot.slane %v1568, 2
        %v1570 = vadd.f32 %v1568, %v1569
        %v1571 = vrot.slane %v1570, 1
        %v1572 = vadd.f32 %v1570, %v1571
        %1573 = vst [vmem:[%s250] sm:$0x1] %v1572
        %s1574 = sand.u32 %s116, 1
        %s1575 = scalar_lea.sflag [#allocation3], %s1574
        %s1576 = sand.u32 %s116, 1
        %s1577 = scalar_lea.vmem [#allocation6], %s1576
        // Predicated region
        $region64: #{tpu_custom_call.1} parent=54 // pred_check
          %p1578 = pneg %p126
        $region65: #{tpu_custom_call.1} parent=54 // pred_check_branch
          %1580 = sbr.rel (%p1578) target = $region67
        $region66: #{tpu_custom_call.1} parent=54 // pred_region
          %s1582 = ssub.s32 16, 16
          %1583 = vsyncadd %s1575, %s1582
          %s1584 = smul.addr %s19, 16
          %s1585 = scalar_lea.hbm %s4, %s1584
          %s1587 = sshll.u32 %s1577, 4
          %s1588 = int_to_ptr.vmem [resolvable:$true] %s1587
          %1590 = dma.vmem_to_hbm [thread:$0]  %s1588, 16, %s1585, %s1575
        $region67: #{tpu_custom_call.1} parent=54 // pred_fallthru
          _
      $region55: #{tpu_custom_call.1} parent=5 // pred_fallthru
        _
      %p1591 = scmp.le.s32.totalorder 2, %s14
      // Predicated region
      $region68: #{tpu_custom_call.1} parent=5 // pred_check
        %p1592 = pneg %p1591
      $region69: #{tpu_custom_call.1} parent=5 // pred_check_branch
        %1594 = sbr.rel (%p1592) target = $region71
      $region70: #{tpu_custom_call.1} parent=5 // pred_region
        %s1595 = ssub.s32 %s14, 2
        // Predicated region
        $region72: #{tpu_custom_call.1} parent=70 // pred_check
          %p1596 = pneg %p132
        $region73: #{tpu_custom_call.1} parent=70 // pred_check_branch
          %1598 = sbr.rel (%p1596) target = $region75
        $region74: #{tpu_custom_call.1} parent=70 // pred_region
          %s1599 = sand.u32 %s117, 1
          %s1600 = scalar_lea.sflag [#allocation3], %s1599
          %s1601 = sand.u32 %s117, 1
          %s1602 = scalar_lea.vmem [#allocation6], %s1601
          %1603 = dma.done %s1600, 16
        $region75: #{tpu_custom_call.1} parent=70 // pred_fallthru
          _
      $region71: #{tpu_custom_call.1} parent=5 // pred_fallthru
        _
    $region6: #{tpu_custom_call.1} parent=1 // loop_footer
      %s18 = sadd.s32 1, %s14
    $region7: #{tpu_custom_call.1} parent=1 // loop_footer_branch
      %13 = sbr.rel target = $region3
    $region8: #{tpu_custom_call.1} parent=1 // loop_exit
      _
    %1604 = vsyncpa [#allocation3], 1
    %s1605 = scalar_lea.sflag [#allocation3], 1
    %1606 = vsyncpa %s1605, 1
    %1607 = vsyncpa [#allocation4], 1
    %s1608 = scalar_lea.sflag [#allocation4], 1
    %1609 = vsyncpa %s1608, 1

</llo_original>
